<compile_context>
chip_gen: v7x
topology: tpu7x:2x2x1
jax: 0.10.0
libtpu: 0.0.40
codegen_flags: <defaults>
</compile_context>

<pallas_src>
import functools

import jax
import jax.numpy as jnp
import numpy as np
from jax.experimental import pallas as pl
from jax.experimental.pallas import tpu as pltpu

EPS = 1e-5


def _round_up(x, m):
    return (x + m - 1) // m * m


# ----------------------------- Pallas kernel -------------------------------

def deepcnn_kernel(x_ref, w1_ref, w2_ref, wf_ref, wr1_ref, wr2_ref, wo_ref,
                   p_ref, out_ref, *, s, seq_len, n_valid):
    """Whole DeepCNN forward on a (C, T) activation resident in VMEM.

    Channels on the sublane axis, flattened batch*length on the lane axis
    (T = padded B*M, multiple of 128).  Static ints: s, seq_len (=M),
    n_valid (=B*M, true lane count for BatchNorm statistics).
    """
    c12, c18, c6, c3 = 12 * s, 18 * s, 6 * s, 3 * s
    tlanes = x_ref.shape[1]

    # Segment-boundary / padding masks (VPU), built once and reused.
    lane = jax.lax.broadcasted_iota(jnp.int32, (1, tlanes), 1)
    pos = lane % seq_len
    has_prev = pos != 0                # lane l-1 exists inside this sequence
    has_next = pos != (seq_len - 1)    # lane l+1 exists inside this sequence

    if n_valid == tlanes:
        valid = None
    else:
        valid = (lane < n_valid).astype(jnp.float32)
    inv_n = 1.0 / float(n_valid)

    P = p_ref[...]                      # packed biases / BN params (Cmax, 14)
    col = lambda c, i: P[:c, i:i + 1]   # static slice -> (c, 1) column

    def conv3(h, w, b):
        # k=3, padding=1 conv as ONE matmul: stack [h_{l-1}; h_l; h_{l+1}].
        hm = jnp.where(has_prev, pltpu.roll(h, 1, axis=1), 0.0)           # h[l-1]
        hp = jnp.where(has_next, pltpu.roll(h, tlanes - 1, axis=1), 0.0)  # h[l+1]
        hs = jnp.concatenate([hm, h, hp], axis=0)                         # (3Ci, T)
        return jnp.dot(w, hs, preferred_element_type=jnp.float32) + b

    def conv1(h, w, b):
        return jnp.dot(w, h, preferred_element_type=jnp.float32) + b

    def bn(h, gamma, beta):
        # Training-mode BatchNorm1d: per-channel stats over the true B*M lanes.
        if valid is None:
            mean = jnp.mean(h, axis=1, keepdims=True)
            d = h - mean
            var = jnp.mean(d * d, axis=1, keepdims=True)
        else:
            mean = jnp.sum(h * valid, axis=1, keepdims=True) * inv_n
            d = (h - mean) * valid
            var = jnp.sum(d * d, axis=1, keepdims=True) * inv_n
        scale = gamma * jax.lax.rsqrt(var + EPS)        # rsqrt -> EUP slot
        return h * scale + (beta - mean * scale)        # single fused FMA tail

    h = x_ref[...]

    # net = Conv3, Conv3, BN, ReLU, (Conv1 x2 fused), BN, Residual, BN, ReLU, Conv1
    h = conv3(h, w1_ref[...], col(c12, 0))        # Conv1d(3s -> 12s, k=3)
    h = conv3(h, w2_ref[...], col(c18, 1))        # Conv1d(12s -> 18s, k=3)
    h = bn(h, col(c18, 2), col(c18, 3))           # BatchNorm1d(18s)
    h = jnp.maximum(h, 0.0)                       # ReLU
    h = conv1(h, wf_ref[...], col(c6, 4))         # fused Conv1d 18s->12s->6s (k=1)
    h = bn(h, col(c6, 5), col(c6, 6))             # BatchNorm1d(6s)

    # ResidualBlock(6s): x + (Conv3 -> BN -> ReLU -> Conv3)
    r = conv3(h, wr1_ref[...], col(c6, 7))
    r = bn(r, col(c6, 8), col(c6, 9))
    r = jnp.maximum(r, 0.0)
    r = conv3(r, wr2_ref[...], col(c6, 10))
    h = h + r

    h = bn(h, col(c6, 11), col(c6, 12))           # BatchNorm1d(6s)
    h = jnp.maximum(h, 0.0)                       # ReLU
    h = conv1(h, wo_ref[...], col(c3, 13))        # Conv1d(6s -> 3s, k=1)

    out_ref[...] = h


# ----------------------------- parameters ----------------------------------

def init_layers(s, key):
    """Deterministic parameter init (PyTorch-like fan-in uniform for convs,
    gamma=1 / beta=0 for BN). Returns a structured layer list."""
    keys = iter(jax.random.split(key, 16))
    layers = []

    def conv(co, ci, k):
        bound = 1.0 / float(np.sqrt(ci * k))
        w = jax.random.uniform(next(keys), (co, ci, k), jnp.float32, -bound, bound)
        b = jax.random.uniform(next(keys), (co,), jnp.float32, -bound, bound)
        layers.append(("conv", w, b))

    def bn(c):
        layers.append(("bn", jnp.ones((c,), jnp.float32), jnp.zeros((c,), jnp.float32)))

    conv(12 * s, 3 * s, 3)
    conv(18 * s, 12 * s, 3)
    bn(18 * s)
    conv(12 * s, 18 * s, 1)
    conv(6 * s, 12 * s, 1)
    bn(6 * s)
    conv(6 * s, 6 * s, 3)   # residual conv 1
    bn(6 * s)               # residual bn
    conv(6 * s, 6 * s, 3)   # residual conv 2
    bn(6 * s)
    conv(3 * s, 6 * s, 1)
    return layers


def prepare_params(layers, s):
    """Pre-pack parameters for the kernel:
       * per-tap k=3 weights concatenated to (Co, 3*Ci) (Ci of the first conv
         padded to a multiple of 8 so the in-kernel sublane concat is aligned),
       * the two back-to-back 1x1 convs folded into one weight/bias,
       * all biases and BN gamma/beta packed into one (Cmax, 14) array.
    """
    # Aligned sublane concat requires the internal channel counts (12s, 6s)
    # to be multiples of 8.
    assert (12 * s) % 8 == 0 and (6 * s) % 8 == 0, "prepare_params: need s % 4 == 0"
    cin_pad = _round_up(3 * s, 8)

    def tapcat(w, ci_pad=None):
        co, ci, k = w.shape
        assert k == 3
        if ci_pad is not None and ci_pad != ci:
            w = jnp.pad(w, ((0, 0), (0, ci_pad - ci), (0, 0)))
        return jnp.concatenate([w[:, :, 0], w[:, :, 1], w[:, :, 2]], axis=1)

    w1 = tapcat(layers[0][1], cin_pad); b1 = layers[0][2]
    w2 = tapcat(layers[1][1]);          b2 = layers[1][2]
    g1, be1 = layers[2][1], layers[2][2]

    w3, b3 = layers[3][1][:, :, 0], layers[3][2]     # (12s, 18s)
    w4, b4 = layers[4][1][:, :, 0], layers[4][2]     # (6s, 12s)
    wf = w4 @ w3                                     # fused 1x1: (6s, 18s)
    bf = w4 @ b3 + b4

    g2, be2 = layers[5][1], layers[5][2]
    wr1 = tapcat(layers[6][1]); br1 = layers[6][2]
    gr, ber = layers[7][1], layers[7][2]
    wr2 = tapcat(layers[8][1]); br2 = layers[8][2]
    g3, be3 = layers[9][1], layers[9][2]
    wo, bo = layers[10][1][:, :, 0], layers[10][2]

    cols = [b1, b2, g1, be1, bf, g2, be2, br1, gr, ber, br2, g3, be3, bo]
    cmax = _round_up(max(c.shape[0] for c in cols), 8)
    P = jnp.stack([jnp.pad(c, (0, cmax - c.shape[0])) for c in cols], axis=1)

    return (w1, w2, wf, wr1, wr2, wo, P)


# ----------------------------- wrapper --------------------------------------

@functools.partial(jax.jit, static_argnames=("s",))
def deepcnn_forward(x, params, *, s):
    """x: (B, 3*s, M) float32, PyTorch NCL layout."""
    B, C, M = x.shape
    assert C == 3 * s
    x = x.astype(jnp.float32)

    # input channel shuffle: view(B,3,s,M).permute(0,2,1,3).reshape(B,3s,M)
    xin = x.reshape(B, 3, s, M).transpose(0, 2, 1, 3).reshape(B, 3 * s, M)
    # pack to (C, B*M) kernel layout (channels = sublanes, batch*length = lanes)
    x2d = xin.transpose(1, 0, 2).reshape(3 * s, B * M)

    T = B * M
    Tpad = _round_up(max(T, 128), 128)        # lane-dense output / activations
    cin_pad = _round_up(3 * s, 8)             # aligned sublane concat in conv3 #1
    x2d = jnp.pad(x2d, ((0, cin_pad - 3 * s), (0, Tpad - T)))

    w1, w2, wf, wr1, wr2, wo, P = params
    kern = functools.partial(deepcnn_kernel, s=s, seq_len=M, n_valid=T)

    out2d = pl.pallas_call(
        kern,
        out_shape=jax.ShapeDtypeStruct((3 * s, Tpad), jnp.float32),
        in_specs=[pl.BlockSpec(memory_space=pltpu.MemorySpace.VMEM)] * 8,
        out_specs=pl.BlockSpec(memory_space=pltpu.MemorySpace.VMEM),
    )(x2d, w1, w2, wf, wr1, wr2, wo, P)

    # unpack back to (B, 3s, M)
    y = out2d[:, :T].reshape(3 * s, B, M).transpose(1, 0, 2)
    # output channel shuffle: view(B,s,3,M).permute(0,2,1,3).reshape(B,3s,M)
    y = y.reshape(B, s, 3, M).transpose(0, 2, 1, 3).reshape(B, 3 * s, M)
    return y


# ----------------------------- pure-JAX reference ---------------------------

def _conv1d_ref(x, w, b):
    # x: (B, Ci, M), w: (Co, Ci, K), b: (Co,)
    K = w.shape[-1]
    pad = (K - 1) // 2
    xp = jnp.pad(x, ((0, 0), (0, 0), (pad, pad)))
    M = x.shape[2]
    out = jnp.zeros((x.shape[0], w.shape[0], M), jnp.float32)
    for k in range(K):
        out = out + jnp.einsum("oi,bil->bol", w[:, :, k], xp[:, :, k:k + M])
    return out + b[None, :, None]


def _bn_ref(x, g, b):
    mean = x.mean(axis=(0, 2), keepdims=True)
    var = ((x - mean) ** 2).mean(axis=(0, 2), keepdims=True)
    return g[None, :, None] * (x - mean) * jax.lax.rsqrt(var + EPS) + b[None, :, None]


def ref_forward(x, layers, s):
    B, _, M = x.shape
    L = layers
    h = x.reshape(B, 3, s, M).transpose(0, 2, 1, 3).reshape(B, 3 * s, M)
    h = _conv1d_ref(h, L[0][1], L[0][2])
    h = _conv1d_ref(h, L[1][1], L[1][2])
    h = _bn_ref(h, L[2][1], L[2][2])
    h = jnp.maximum(h, 0.0)
    h = _conv1d_ref(h, L[3][1], L[3][2])
    h = _conv1d_ref(h, L[4][1], L[4][2])
    h = _bn_ref(h, L[5][1], L[5][2])
    r = _conv1d_ref(h, L[6][1], L[6][2])
    r = _bn_ref(r, L[7][1], L[7][2])
    r = jnp.maximum(r, 0.0)
    r = _conv1d_ref(r, L[8][1], L[8][2])
    h = h + r
    h = _bn_ref(h, L[9][1], L[9][2])
    h = jnp.maximum(h, 0.0)
    h = _conv1d_ref(h, L[10][1], L[10][2])
    h = h.reshape(B, s, 3, M).transpose(0, 2, 1, 3).reshape(B, 3 * s, M)
    return h


# ----------------------------- main ------------------------------------------

if __name__ == "__main__":
    s = 4          # DeepCNN(s=4): channels 3s=12 -> 12s=48 -> 18s=72 -> ... -> 3s=12

    key = jax.random.PRNGKey(0)
    kx1, kx2, kp = jax.random.split(key, 3)

    layers = init_layers(s, kp)
    params = prepare_params(layers, s)

    # Case 1: lane-dense (B*M is a multiple of 128) — fast path, no padding.
    B, M = 2, 128
    x = jax.random.normal(kx1, (B, 3 * s, M), jnp.float32)
    y = jax.block_until_ready(deepcnn_forward(x, params, s=s))
    assert y.shape == (B, 3 * s, M), y.shape
    y_ref = jax.block_until_ready(ref_forward(x, layers, s))
    np.testing.assert_allclose(np.asarray(y), np.asarray(y_ref), rtol=1e-3, atol=1e-3)

    # Case 2: ragged B*M (exercises lane padding + masked BatchNorm statistics).
    B2, M2 = 3, 40
    x2 = jax.random.normal(kx2, (B2, 3 * s, M2), jnp.float32)
    y2 = jax.block_until_ready(deepcnn_forward(x2, params, s=s))
    assert y2.shape == (B2, 3 * s, M2), y2.shape
    y2_ref = jax.block_until_ready(ref_forward(x2, layers, s))
    np.testing.assert_allclose(np.asarray(y2), np.asarray(y2_ref), rtol=1e-3, atol=1e-3)

    print("KERNEL_OK")
</pallas_src>

<mosaic_0001>
module attributes {stable_mosaic.version = 11 : i64} {
  func.func @deepcnn_kernel(%arg0: memref<16x256xf32, #tpu.memory_space<vmem>>, %arg1: memref<48x48xf32, #tpu.memory_space<vmem>>, %arg2: memref<72x144xf32, #tpu.memory_space<vmem>>, %arg3: memref<24x72xf32, #tpu.memory_space<vmem>>, %arg4: memref<24x72xf32, #tpu.memory_space<vmem>>, %arg5: memref<24x72xf32, #tpu.memory_space<vmem>>, %arg6: memref<12x24xf32, #tpu.memory_space<vmem>>, %arg7: memref<72x14xf32, #tpu.memory_space<vmem>>, %arg8: memref<12x256xf32, #tpu.memory_space<vmem>>) attributes {dimension_semantics = [], scalar_prefetch = 0 : i64, scratch_operands = 0 : i64, tpu.core_type = #tpu.core_type<tc>} {
    %0 = tpu.iota {dimensions = array<i32: 1>} : vector<1x256xi32>
    %c128_i32 = arith.constant 128 : i32
    %c0_i32 = arith.constant 0 : i32
    %1 = arith.cmpi eq, %c128_i32, %c0_i32 : i32
    %c1_i32 = arith.constant 1 : i32
    %2 = arith.select %1, %c1_i32, %c128_i32 : i32
    %3 = vector.broadcast %2 : i32 to vector<1x256xi32>
    %4 = arith.remsi %0, %3 : vector<1x256xi32>
    %c0_i32_0 = arith.constant 0 : i32
    %5 = vector.broadcast %c0_i32_0 : i32 to vector<1x256xi32>
    %6 = arith.cmpi ne, %4, %5 : vector<1x256xi32>
    %c0_i32_1 = arith.constant 0 : i32
    %7 = vector.broadcast %c0_i32_1 : i32 to vector<1x256xi32>
    %8 = arith.cmpi slt, %4, %7 : vector<1x256xi32>
    %c0_i32_2 = arith.constant 0 : i32
    %9 = arith.cmpi slt, %2, %c0_i32_2 : i32
    %10 = vector.broadcast %9 : i1 to vector<1x256xi1>
    %11 = vector.broadcast %10 : vector<1x256xi1> to vector<1x256xi1>
    %12 = arith.xori %8, %11 : vector<1x256xi1>
    %13 = arith.andi %12, %6 : vector<1x256xi1>
    %14 = vector.broadcast %2 : i32 to vector<1x256xi32>
    %15 = arith.addi %4, %14 : vector<1x256xi32>
    %16 = arith.select %13, %15, %4 : vector<1x256xi1>, vector<1x256xi32>
    %c0_i32_3 = arith.constant 0 : i32
    %17 = vector.broadcast %c0_i32_3 : i32 to vector<1x256xi32>
    %18 = arith.cmpi ne, %16, %17 : vector<1x256xi32>
    %c127_i32 = arith.constant 127 : i32
    %19 = vector.broadcast %c127_i32 : i32 to vector<1x256xi32>
    %20 = arith.cmpi ne, %16, %19 : vector<1x256xi32>
    %c0 = arith.constant 0 : index
    %c0_4 = arith.constant 0 : index
    %21 = vector.load %arg7[%c0, %c0_4] : memref<72x14xf32, #tpu.memory_space<vmem>>, vector<72x14xf32>
    %c0_5 = arith.constant 0 : index
    %c0_6 = arith.constant 0 : index
    %22 = vector.load %arg0[%c0_5, %c0_6] : memref<16x256xf32, #tpu.memory_space<vmem>>, vector<16x256xf32>
    %c0_7 = arith.constant 0 : index
    %c0_8 = arith.constant 0 : index
    %23 = vector.load %arg1[%c0_7, %c0_8] : memref<48x48xf32, #tpu.memory_space<vmem>>, vector<48x48xf32>
    %24 = vector.extract_strided_slice %21 {offsets = [0, 0], sizes = [48, 1], strides = [1, 1]} : vector<72x14xf32> to vector<48x1xf32>
    %c1_i32_9 = arith.constant 1 : i32
    %25 = tpu.dynamic_rotate %22 by %c1_i32_9 dim 1 : vector<16x256xf32>, i32 -> vector<16x256xf32>
    %cst = arith.constant 0.000000e+00 : f32
    %26 = vector.shape_cast %18 : vector<1x256xi1> to vector<1x256xi1>
    %27 = vector.broadcast %26 : vector<1x256xi1> to vector<16x256xi1>
    %28 = vector.broadcast %cst : f32 to vector<16x256xf32>
    %29 = arith.select %27, %25, %28 : vector<16x256xi1>, vector<16x256xf32>
    %c255_i32 = arith.constant 255 : i32
    %30 = tpu.dynamic_rotate %22 by %c255_i32 dim 1 : vector<16x256xf32>, i32 -> vector<16x256xf32>
    %cst_10 = arith.constant 0.000000e+00 : f32
    %31 = vector.shape_cast %20 : vector<1x256xi1> to vector<1x256xi1>
    %32 = vector.broadcast %31 : vector<1x256xi1> to vector<16x256xi1>
    %33 = vector.broadcast %cst_10 : f32 to vector<16x256xf32>
    %34 = arith.select %32, %30, %33 : vector<16x256xi1>, vector<16x256xf32>
    %35 = tpu.concatenate %29, %22, %34 in 0 : vector<16x256xf32>, vector<16x256xf32>, vector<16x256xf32> -> vector<48x256xf32>
    %cst_11 = arith.constant dense<0.000000e+00> : vector<48x256xf32>
    %36 = tpu.matmul %23, %35, %cst_11 {dimension_numbers = #tpu.dot_dimension_numbers<[1], [0], [0], [1], [0, 0, 1, 1], [], []>} : vector<48x48xf32>, vector<48x256xf32>, vector<48x256xf32> -> vector<48x256xf32>
    %37 = vector.broadcast %24 : vector<48x1xf32> to vector<48x256xf32>
    %38 = arith.addf %36, %37 : vector<48x256xf32>
    %c0_12 = arith.constant 0 : index
    %c0_13 = arith.constant 0 : index
    %39 = vector.load %arg2[%c0_12, %c0_13] : memref<72x144xf32, #tpu.memory_space<vmem>>, vector<72x144xf32>
    %40 = vector.extract_strided_slice %21 {offsets = [0, 1], sizes = [72, 1], strides = [1, 1]} : vector<72x14xf32> to vector<72x1xf32>
    %c1_i32_14 = arith.constant 1 : i32
    %41 = tpu.dynamic_rotate %38 by %c1_i32_14 dim 1 : vector<48x256xf32>, i32 -> vector<48x256xf32>
    %cst_15 = arith.constant 0.000000e+00 : f32
    %42 = vector.shape_cast %18 : vector<1x256xi1> to vector<1x256xi1>
    %43 = vector.broadcast %42 : vector<1x256xi1> to vector<48x256xi1>
    %44 = vector.broadcast %cst_15 : f32 to vector<48x256xf32>
    %45 = arith.select %43, %41, %44 : vector<48x256xi1>, vector<48x256xf32>
    %c255_i32_16 = arith.constant 255 : i32
    %46 = tpu.dynamic_rotate %38 by %c255_i32_16 dim 1 : vector<48x256xf32>, i32 -> vector<48x256xf32>
    %cst_17 = arith.constant 0.000000e+00 : f32
    %47 = vector.shape_cast %20 : vector<1x256xi1> to vector<1x256xi1>
    %48 = vector.broadcast %47 : vector<1x256xi1> to vector<48x256xi1>
    %49 = vector.broadcast %cst_17 : f32 to vector<48x256xf32>
    %50 = arith.select %48, %46, %49 : vector<48x256xi1>, vector<48x256xf32>
    %51 = tpu.concatenate %45, %38, %50 in 0 : vector<48x256xf32>, vector<48x256xf32>, vector<48x256xf32> -> vector<144x256xf32>
    %cst_18 = arith.constant dense<0.000000e+00> : vector<72x256xf32>
    %52 = tpu.matmul %39, %51, %cst_18 {dimension_numbers = #tpu.dot_dimension_numbers<[1], [0], [0], [1], [0, 0, 1, 1], [], []>} : vector<72x144xf32>, vector<144x256xf32>, vector<72x256xf32> -> vector<72x256xf32>
    %53 = vector.broadcast %40 : vector<72x1xf32> to vector<72x256xf32>
    %54 = arith.addf %52, %53 : vector<72x256xf32>
    %55 = vector.extract_strided_slice %21 {offsets = [0, 2], sizes = [72, 1], strides = [1, 1]} : vector<72x14xf32> to vector<72x1xf32>
    %56 = vector.extract_strided_slice %21 {offsets = [0, 3], sizes = [72, 1], strides = [1, 1]} : vector<72x14xf32> to vector<72x1xf32>
    %cst_19 = arith.constant dense<0.000000e+00> : vector<72xf32>
    %57 = vector.multi_reduction <add>, %54, %cst_19 [1] : vector<72x256xf32> to vector<72xf32>
    %58 = vector.shape_cast %57 : vector<72xf32> to vector<72x1xf32>
    %cst_20 = arith.constant 2.560000e+02 : f32
    %59 = vector.broadcast %cst_20 : f32 to vector<72x1xf32>
    %60 = arith.divf %58, %59 : vector<72x1xf32>
    %61 = vector.broadcast %60 : vector<72x1xf32> to vector<72x256xf32>
    %62 = arith.subf %54, %61 : vector<72x256xf32>
    %63 = arith.mulf %62, %62 : vector<72x256xf32>
    %cst_21 = arith.constant dense<0.000000e+00> : vector<72xf32>
    %64 = vector.multi_reduction <add>, %63, %cst_21 [1] : vector<72x256xf32> to vector<72xf32>
    %65 = vector.shape_cast %64 : vector<72xf32> to vector<72x1xf32>
    %cst_22 = arith.constant 2.560000e+02 : f32
    %66 = vector.broadcast %cst_22 : f32 to vector<72x1xf32>
    %67 = arith.divf %65, %66 : vector<72x1xf32>
    %cst_23 = arith.constant 9.99999974E-6 : f32
    %68 = vector.broadcast %cst_23 : f32 to vector<72x1xf32>
    %69 = arith.addf %67, %68 : vector<72x1xf32>
    %70 = math.rsqrt %69 : vector<72x1xf32>
    %71 = arith.mulf %55, %70 : vector<72x1xf32>
    %72 = vector.broadcast %71 : vector<72x1xf32> to vector<72x256xf32>
    %73 = arith.mulf %54, %72 : vector<72x256xf32>
    %74 = arith.mulf %60, %71 : vector<72x1xf32>
    %75 = arith.subf %56, %74 : vector<72x1xf32>
    %76 = vector.broadcast %75 : vector<72x1xf32> to vector<72x256xf32>
    %77 = arith.addf %73, %76 : vector<72x256xf32>
    %cst_24 = arith.constant 0.000000e+00 : f32
    %78 = vector.broadcast %cst_24 : f32 to vector<72x256xf32>
    %79 = arith.maximumf %77, %78 : vector<72x256xf32>
    %c0_25 = arith.constant 0 : index
    %c0_26 = arith.constant 0 : index
    %80 = vector.load %arg3[%c0_25, %c0_26] : memref<24x72xf32, #tpu.memory_space<vmem>>, vector<24x72xf32>
    %81 = vector.extract_strided_slice %21 {offsets = [0, 4], sizes = [24, 1], strides = [1, 1]} : vector<72x14xf32> to vector<24x1xf32>
    %cst_27 = arith.constant dense<0.000000e+00> : vector<24x256xf32>
    %82 = tpu.matmul %80, %79, %cst_27 {dimension_numbers = #tpu.dot_dimension_numbers<[1], [0], [0], [1], [0, 0, 1, 1], [], []>} : vector<24x72xf32>, vector<72x256xf32>, vector<24x256xf32> -> vector<24x256xf32>
    %83 = vector.broadcast %81 : vector<24x1xf32> to vector<24x256xf32>
    %84 = arith.addf %82, %83 : vector<24x256xf32>
    %85 = vector.extract_strided_slice %21 {offsets = [0, 5], sizes = [24, 1], strides = [1, 1]} : vector<72x14xf32> to vector<24x1xf32>
    %86 = vector.extract_strided_slice %21 {offsets = [0, 6], sizes = [24, 1], strides = [1, 1]} : vector<72x14xf32> to vector<24x1xf32>
    %cst_28 = arith.constant dense<0.000000e+00> : vector<24xf32>
    %87 = vector.multi_reduction <add>, %84, %cst_28 [1] : vector<24x256xf32> to vector<24xf32>
    %88 = vector.shape_cast %87 : vector<24xf32> to vector<24x1xf32>
    %cst_29 = arith.constant 2.560000e+02 : f32
    %89 = vector.broadcast %cst_29 : f32 to vector<24x1xf32>
    %90 = arith.divf %88, %89 : vector<24x1xf32>
    %91 = vector.broadcast %90 : vector<24x1xf32> to vector<24x256xf32>
    %92 = arith.subf %84, %91 : vector<24x256xf32>
    %93 = arith.mulf %92, %92 : vector<24x256xf32>
    %cst_30 = arith.constant dense<0.000000e+00> : vector<24xf32>
    %94 = vector.multi_reduction <add>, %93, %cst_30 [1] : vector<24x256xf32> to vector<24xf32>
    %95 = vector.shape_cast %94 : vector<24xf32> to vector<24x1xf32>
    %cst_31 = arith.constant 2.560000e+02 : f32
    %96 = vector.broadcast %cst_31 : f32 to vector<24x1xf32>
    %97 = arith.divf %95, %96 : vector<24x1xf32>
    %cst_32 = arith.constant 9.99999974E-6 : f32
    %98 = vector.broadcast %cst_32 : f32 to vector<24x1xf32>
    %99 = arith.addf %97, %98 : vector<24x1xf32>
    %100 = math.rsqrt %99 : vector<24x1xf32>
    %101 = arith.mulf %85, %100 : vector<24x1xf32>
    %102 = vector.broadcast %101 : vector<24x1xf32> to vector<24x256xf32>
    %103 = arith.mulf %84, %102 : vector<24x256xf32>
    %104 = arith.mulf %90, %101 : vector<24x1xf32>
    %105 = arith.subf %86, %104 : vector<24x1xf32>
    %106 = vector.broadcast %105 : vector<24x1xf32> to vector<24x256xf32>
    %107 = arith.addf %103, %106 : vector<24x256xf32>
    %c0_33 = arith.constant 0 : index
    %c0_34 = arith.constant 0 : index
    %108 = vector.load %arg4[%c0_33, %c0_34] : memref<24x72xf32, #tpu.memory_space<vmem>>, vector<24x72xf32>
    %109 = vector.extract_strided_slice %21 {offsets = [0, 7], sizes = [24, 1], strides = [1, 1]} : vector<72x14xf32> to vector<24x1xf32>
    %c1_i32_35 = arith.constant 1 : i32
    %110 = tpu.dynamic_rotate %107 by %c1_i32_35 dim 1 : vector<24x256xf32>, i32 -> vector<24x256xf32>
    %cst_36 = arith.constant 0.000000e+00 : f32
    %111 = vector.shape_cast %18 : vector<1x256xi1> to vector<1x256xi1>
    %112 = vector.broadcast %111 : vector<1x256xi1> to vector<24x256xi1>
    %113 = vector.broadcast %cst_36 : f32 to vector<24x256xf32>
    %114 = arith.select %112, %110, %113 : vector<24x256xi1>, vector<24x256xf32>
    %c255_i32_37 = arith.constant 255 : i32
    %115 = tpu.dynamic_rotate %107 by %c255_i32_37 dim 1 : vector<24x256xf32>, i32 -> vector<24x256xf32>
    %cst_38 = arith.constant 0.000000e+00 : f32
    %116 = vector.shape_cast %20 : vector<1x256xi1> to vector<1x256xi1>
    %117 = vector.broadcast %116 : vector<1x256xi1> to vector<24x256xi1>
    %118 = vector.broadcast %cst_38 : f32 to vector<24x256xf32>
    %119 = arith.select %117, %115, %118 : vector<24x256xi1>, vector<24x256xf32>
    %120 = tpu.concatenate %114, %107, %119 in 0 : vector<24x256xf32>, vector<24x256xf32>, vector<24x256xf32> -> vector<72x256xf32>
    %cst_39 = arith.constant dense<0.000000e+00> : vector<24x256xf32>
    %121 = tpu.matmul %108, %120, %cst_39 {dimension_numbers = #tpu.dot_dimension_numbers<[1], [0], [0], [1], [0, 0, 1, 1], [], []>} : vector<24x72xf32>, vector<72x256xf32>, vector<24x256xf32> -> vector<24x256xf32>
    %122 = vector.broadcast %109 : vector<24x1xf32> to vector<24x256xf32>
    %123 = arith.addf %121, %122 : vector<24x256xf32>
    %124 = vector.extract_strided_slice %21 {offsets = [0, 8], sizes = [24, 1], strides = [1, 1]} : vector<72x14xf32> to vector<24x1xf32>
    %125 = vector.extract_strided_slice %21 {offsets = [0, 9], sizes = [24, 1], strides = [1, 1]} : vector<72x14xf32> to vector<24x1xf32>
    %cst_40 = arith.constant dense<0.000000e+00> : vector<24xf32>
    %126 = vector.multi_reduction <add>, %123, %cst_40 [1] : vector<24x256xf32> to vector<24xf32>
    %127 = vector.shape_cast %126 : vector<24xf32> to vector<24x1xf32>
    %cst_41 = arith.constant 2.560000e+02 : f32
    %128 = vector.broadcast %cst_41 : f32 to vector<24x1xf32>
    %129 = arith.divf %127, %128 : vector<24x1xf32>
    %130 = vector.broadcast %129 : vector<24x1xf32> to vector<24x256xf32>
    %131 = arith.subf %123, %130 : vector<24x256xf32>
    %132 = arith.mulf %131, %131 : vector<24x256xf32>
    %cst_42 = arith.constant dense<0.000000e+00> : vector<24xf32>
    %133 = vector.multi_reduction <add>, %132, %cst_42 [1] : vector<24x256xf32> to vector<24xf32>
    %134 = vector.shape_cast %133 : vector<24xf32> to vector<24x1xf32>
    %cst_43 = arith.constant 2.560000e+02 : f32
    %135 = vector.broadcast %cst_43 : f32 to vector<24x1xf32>
    %136 = arith.divf %134, %135 : vector<24x1xf32>
    %cst_44 = arith.constant 9.99999974E-6 : f32
    %137 = vector.broadcast %cst_44 : f32 to vector<24x1xf32>
    %138 = arith.addf %136, %137 : vector<24x1xf32>
    %139 = math.rsqrt %138 : vector<24x1xf32>
    %140 = arith.mulf %124, %139 : vector<24x1xf32>
    %141 = vector.broadcast %140 : vector<24x1xf32> to vector<24x256xf32>
    %142 = arith.mulf %123, %141 : vector<24x256xf32>
    %143 = arith.mulf %129, %140 : vector<24x1xf32>
    %144 = arith.subf %125, %143 : vector<24x1xf32>
    %145 = vector.broadcast %144 : vector<24x1xf32> to vector<24x256xf32>
    %146 = arith.addf %142, %145 : vector<24x256xf32>
    %cst_45 = arith.constant 0.000000e+00 : f32
    %147 = vector.broadcast %cst_45 : f32 to vector<24x256xf32>
    %148 = arith.maximumf %146, %147 : vector<24x256xf32>
    %c0_46 = arith.constant 0 : index
    %c0_47 = arith.constant 0 : index
    %149 = vector.load %arg5[%c0_46, %c0_47] : memref<24x72xf32, #tpu.memory_space<vmem>>, vector<24x72xf32>
    %150 = vector.extract_strided_slice %21 {offsets = [0, 10], sizes = [24, 1], strides = [1, 1]} : vector<72x14xf32> to vector<24x1xf32>
    %c1_i32_48 = arith.constant 1 : i32
    %151 = tpu.dynamic_rotate %148 by %c1_i32_48 dim 1 : vector<24x256xf32>, i32 -> vector<24x256xf32>
    %cst_49 = arith.constant 0.000000e+00 : f32
    %152 = vector.shape_cast %18 : vector<1x256xi1> to vector<1x256xi1>
    %153 = vector.broadcast %152 : vector<1x256xi1> to vector<24x256xi1>
    %154 = vector.broadcast %cst_49 : f32 to vector<24x256xf32>
    %155 = arith.select %153, %151, %154 : vector<24x256xi1>, vector<24x256xf32>
    %c255_i32_50 = arith.constant 255 : i32
    %156 = tpu.dynamic_rotate %148 by %c255_i32_50 dim 1 : vector<24x256xf32>, i32 -> vector<24x256xf32>
    %cst_51 = arith.constant 0.000000e+00 : f32
    %157 = vector.shape_cast %20 : vector<1x256xi1> to vector<1x256xi1>
    %158 = vector.broadcast %157 : vector<1x256xi1> to vector<24x256xi1>
    %159 = vector.broadcast %cst_51 : f32 to vector<24x256xf32>
    %160 = arith.select %158, %156, %159 : vector<24x256xi1>, vector<24x256xf32>
    %161 = tpu.concatenate %155, %148, %160 in 0 : vector<24x256xf32>, vector<24x256xf32>, vector<24x256xf32> -> vector<72x256xf32>
    %cst_52 = arith.constant dense<0.000000e+00> : vector<24x256xf32>
    %162 = tpu.matmul %149, %161, %cst_52 {dimension_numbers = #tpu.dot_dimension_numbers<[1], [0], [0], [1], [0, 0, 1, 1], [], []>} : vector<24x72xf32>, vector<72x256xf32>, vector<24x256xf32> -> vector<24x256xf32>
    %163 = vector.broadcast %150 : vector<24x1xf32> to vector<24x256xf32>
    %164 = arith.addf %162, %163 : vector<24x256xf32>
    %165 = arith.addf %107, %164 : vector<24x256xf32>
    %166 = vector.extract_strided_slice %21 {offsets = [0, 11], sizes = [24, 1], strides = [1, 1]} : vector<72x14xf32> to vector<24x1xf32>
    %167 = vector.extract_strided_slice %21 {offsets = [0, 12], sizes = [24, 1], strides = [1, 1]} : vector<72x14xf32> to vector<24x1xf32>
    %cst_53 = arith.constant dense<0.000000e+00> : vector<24xf32>
    %168 = vector.multi_reduction <add>, %165, %cst_53 [1] : vector<24x256xf32> to vector<24xf32>
    %169 = vector.shape_cast %168 : vector<24xf32> to vector<24x1xf32>
    %cst_54 = arith.constant 2.560000e+02 : f32
    %170 = vector.broadcast %cst_54 : f32 to vector<24x1xf32>
    %171 = arith.divf %169, %170 : vector<24x1xf32>
    %172 = vector.broadcast %171 : vector<24x1xf32> to vector<24x256xf32>
    %173 = arith.subf %165, %172 : vector<24x256xf32>
    %174 = arith.mulf %173, %173 : vector<24x256xf32>
    %cst_55 = arith.constant dense<0.000000e+00> : vector<24xf32>
    %175 = vector.multi_reduction <add>, %174, %cst_55 [1] : vector<24x256xf32> to vector<24xf32>
    %176 = vector.shape_cast %175 : vector<24xf32> to vector<24x1xf32>
    %cst_56 = arith.constant 2.560000e+02 : f32
    %177 = vector.broadcast %cst_56 : f32 to vector<24x1xf32>
    %178 = arith.divf %176, %177 : vector<24x1xf32>
    %cst_57 = arith.constant 9.99999974E-6 : f32
    %179 = vector.broadcast %cst_57 : f32 to vector<24x1xf32>
    %180 = arith.addf %178, %179 : vector<24x1xf32>
    %181 = math.rsqrt %180 : vector<24x1xf32>
    %182 = arith.mulf %166, %181 : vector<24x1xf32>
    %183 = vector.broadcast %182 : vector<24x1xf32> to vector<24x256xf32>
    %184 = arith.mulf %165, %183 : vector<24x256xf32>
    %185 = arith.mulf %171, %182 : vector<24x1xf32>
    %186 = arith.subf %167, %185 : vector<24x1xf32>
    %187 = vector.broadcast %186 : vector<24x1xf32> to vector<24x256xf32>
    %188 = arith.addf %184, %187 : vector<24x256xf32>
    %cst_58 = arith.constant 0.000000e+00 : f32
    %189 = vector.broadcast %cst_58 : f32 to vector<24x256xf32>
    %190 = arith.maximumf %188, %189 : vector<24x256xf32>
    %c0_59 = arith.constant 0 : index
    %c0_60 = arith.constant 0 : index
    %191 = vector.load %arg6[%c0_59, %c0_60] : memref<12x24xf32, #tpu.memory_space<vmem>>, vector<12x24xf32>
    %192 = vector.extract_strided_slice %21 {offsets = [0, 13], sizes = [12, 1], strides = [1, 1]} : vector<72x14xf32> to vector<12x1xf32>
    %cst_61 = arith.constant dense<0.000000e+00> : vector<12x256xf32>
    %193 = tpu.matmul %191, %190, %cst_61 {dimension_numbers = #tpu.dot_dimension_numbers<[1], [0], [0], [1], [0, 0, 1, 1], [], []>} : vector<12x24xf32>, vector<24x256xf32>, vector<12x256xf32> -> vector<12x256xf32>
    %194 = vector.broadcast %192 : vector<12x1xf32> to vector<12x256xf32>
    %195 = arith.addf %193, %194 : vector<12x256xf32>
    %c0_62 = arith.constant 0 : index
    %c0_63 = arith.constant 0 : index
    %196 = vector.load %arg8[%c0_62, %c0_63] : memref<12x256xf32, #tpu.memory_space<vmem>>, vector<12x256xf32>
    tpu.vector_store %arg8[%c0_62, %c0_63], %195 {strides = array<i32>} : memref<12x256xf32, #tpu.memory_space<vmem>>, vector<12x256xf32>,
    return
  }
}

</mosaic_0001>

<llo_original>
// kernel: deepcnn_forward.1
$region0: #{deepcnn_forward.1}
  #allocation0 [shape = 'u32[]', space=smem, size = 0x4, offset = 0x4, fixed_abs, tag = 'smem constant byte address 0x4 - core index']
  #allocation1 [shape = 'u32[144,128]{1,0:T(1,128)}', space=vmem, size = 0x12000, scoped, tag = 'internal scratch']
  %s0 = inlined_call_operand.vmem [shape: f32[16,256], index: 0, kind: input, shape index: {}]
  %s1 = inlined_call_operand.vmem [shape: f32[48,48], index: 1, kind: input, shape index: {}]
  %s2 = inlined_call_operand.vmem [shape: f32[72,144], index: 2, kind: input, shape index: {}]
  %s3 = inlined_call_operand.vmem [shape: f32[24,72], index: 3, kind: input, shape index: {}]
  %s4 = inlined_call_operand.vmem [shape: f32[24,72], index: 4, kind: input, shape index: {}]
  %s5 = inlined_call_operand.vmem [shape: f32[24,72], index: 5, kind: input, shape index: {}]
  %s6 = inlined_call_operand.vmem [shape: f32[12,24], index: 6, kind: input, shape index: {}]
  %s7 = inlined_call_operand.vmem [shape: f32[72,14], index: 7, kind: input, shape index: {}]
  %s8 = inlined_call_operand.vmem [shape: f32[12,256], index: 8, kind: output, shape index: {}]
  %s9 = sld [smem:[#allocation0]]
  $region42: #{deepcnn_forward.1} parent=0
    _
  %s11 = ssub.s32 1, %s9
  %s12 = scalar_select 0, %s11, %s9
  // Predicated region
  $region2: #{deepcnn_forward.1} parent=0 // pred_check
    _
  $region3: #{deepcnn_forward.1} parent=0 // pred_check_branch
    %14 = sbr.rel (0) target = $region5
  $region4: #{deepcnn_forward.1} parent=0 // pred_region
    _
  $region5: #{deepcnn_forward.1} parent=0 // pred_fallthru
    _
  // Predicated region
  $region6: #{deepcnn_forward.1} parent=0 // pred_check
    _
  $region7: #{deepcnn_forward.1} parent=0 // pred_check_branch
    %16 = sbr.rel (0) target = $region9
  $region8: #{deepcnn_forward.1} parent=0 // pred_region
    _
  $region9: #{deepcnn_forward.1} parent=0 // pred_fallthru
    _
  // Predicated region
  $region10: #{deepcnn_forward.1} parent=0 // pred_check
    _
  $region11: #{deepcnn_forward.1} parent=0 // pred_check_branch
    %18 = sbr.rel (0) target = $region13
  $region12: #{deepcnn_forward.1} parent=0 // pred_region
    _
  $region13: #{deepcnn_forward.1} parent=0 // pred_fallthru
    _
  // Predicated region
  $region14: #{deepcnn_forward.1} parent=0 // pred_check
    _
  $region15: #{deepcnn_forward.1} parent=0 // pred_check_branch
    %20 = sbr.rel (0) target = $region17
  $region16: #{deepcnn_forward.1} parent=0 // pred_region
    _
  $region17: #{deepcnn_forward.1} parent=0 // pred_fallthru
    _
  // Predicated region
  $region18: #{deepcnn_forward.1} parent=0 // pred_check
    _
  $region19: #{deepcnn_forward.1} parent=0 // pred_check_branch
    %22 = sbr.rel (0) target = $region21
  $region20: #{deepcnn_forward.1} parent=0 // pred_region
    _
  $region21: #{deepcnn_forward.1} parent=0 // pred_fallthru
    _
  // Predicated region
  $region22: #{deepcnn_forward.1} parent=0 // pred_check
    _
  $region23: #{deepcnn_forward.1} parent=0 // pred_check_branch
    %24 = sbr.rel (0) target = $region25
  $region24: #{deepcnn_forward.1} parent=0 // pred_region
    _
  $region25: #{deepcnn_forward.1} parent=0 // pred_fallthru
    _
  // Predicated region
  $region26: #{deepcnn_forward.1} parent=0 // pred_check
    _
  $region27: #{deepcnn_forward.1} parent=0 // pred_check_branch
    %26 = sbr.rel (0) target = $region29
  $region28: #{deepcnn_forward.1} parent=0 // pred_region
    _
  $region29: #{deepcnn_forward.1} parent=0 // pred_fallthru
    _
  // Predicated region
  $region30: #{deepcnn_forward.1} parent=0 // pred_check
    _
  $region31: #{deepcnn_forward.1} parent=0 // pred_check_branch
    %28 = sbr.rel (0) target = $region33
  $region32: #{deepcnn_forward.1} parent=0 // pred_region
    _
  $region33: #{deepcnn_forward.1} parent=0 // pred_fallthru
    _
  %v29 = vlaneseq
  %v30 = vand.u32 %v29, 127
  %v31 = vadd.s32 %v30, 128
  %vm32 = vcmp.lt.s32.totalorder %v30, 0
  %v33 = vsub.s32 0, %v30
  %v34 = vsel %vm32, %v33, %v30
  %v35 = vshrl.u32 %v34, 7
  %v36 = vand.u32 %v34, 127
  %v37 = vsub.s32 0, %v36
  %v38 = vsel %vm32, %v37, %v36
  %vm39 = vcmp.lt.s32.totalorder %v31, 0
  %v40 = vsub.s32 0, %v31
  %v41 = vsel %vm39, %v40, %v31
  %v42 = vshrl.u32 %v41, 7
  %v43 = vand.u32 %v41, 127
  %v44 = vsub.s32 0, %v43
  %v45 = vsel %vm39, %v44, %v43
  %vm46 = vcmp.ne.s32.totalorder %v38, 0
  %vm47 = vcmp.ne.s32.totalorder %v45, 0
  %vm48 = vcmp.lt.s32.totalorder %v38, 0
  %vm49 = vcmp.lt.s32.totalorder %v45, 0
  %vm50 = vmand %vm48, %vm46
  %vm51 = vmand %vm49, %vm47
  %v52 = vadd.s32 %v38, 128
  %v53 = vadd.s32 %v45, 128
  %v54 = vsel %vm50, %v52, %v38
  %v55 = vsel %vm51, %v53, %v45
  %vm56 = vcmp.ne.s32.totalorder %v54, 0
  %vm57 = vcmp.ne.s32.totalorder %v55, 0
  %vm58 = vcmp.ne.s32.totalorder %v54, 127
  %vm59 = vcmp.ne.s32.totalorder %v55, 127
  %v60 = vld [vmem:[%s7] sm:$0xff]
  %v61 = vld [vmem:[%s7 + $0x8] sm:$0xff]
  %v62 = vld [vmem:[%s7 + $0x10] sm:$0xff]
  %v63 = vld [vmem:[%s7 + $0x18] sm:$0xff]
  %v64 = vld [vmem:[%s7 + $0x20] sm:$0xff]
  %v65 = vld [vmem:[%s7 + $0x28] sm:$0xff]
  %v66 = vld [vmem:[%s7 + $0x30] sm:$0xff]
  %v67 = vld [vmem:[%s7 + $0x38] sm:$0xff]
  %v68 = vld [vmem:[%s7 + $0x40] sm:$0xff]
  %v69 = vld [vmem:[%s0] sm:$0xff]
  %v70 = vld [vmem:[%s0 + $0x8] sm:$0xff]
  %v71 = vld [vmem:[%s0 + $0x10] sm:$0xff]
  %v72 = vld [vmem:[%s0 + $0x18] sm:$0xff]
  %v73 = vld [vmem:[%s1] sm:$0xff]
  %v74 = vld [vmem:[%s1 + $0x8] sm:$0xff]
  %v75 = vld [vmem:[%s1 + $0x10] sm:$0xff]
  %v76 = vld [vmem:[%s1 + $0x18] sm:$0xff]
  %v77 = vld [vmem:[%s1 + $0x20] sm:$0xff]
  %v78 = vld [vmem:[%s1 + $0x28] sm:$0xff]
  %79 = vrot.lane.b32.xlu0 %v69, 1
  %v80 = vpop.permute.xlu0 %79
  %81 = vrot.lane.b32.xlu0 %v71, 1
  %v82 = vpop.permute.xlu0 %81
  %83 = vrot.lane.b32.xlu0 %v70, 1
  %v84 = vpop.permute.xlu0 %83
  %85 = vrot.lane.b32.xlu0 %v72, 1
  %v86 = vpop.permute.xlu0 %85
  %vm87 = vcmp.lt.s32.totalorder %v30, 1
  %v88 = vsel %vm87, %v80, %v84
  %v89 = vsel %vm87, %v82, %v86
  %v90 = vsel %vm87, %v84, %v80
  %v91 = vsel %vm87, %v86, %v82
  %v92 = vsel %vm56, 1, 0
  %v93 = vsel %vm57, 1, 0
  %vm94 = vcmp.eq.s32.totalorder %v92, 1
  %vm95 = vcmp.eq.s32.totalorder %v93, 1
  %v96 = vsel %vm94, %v90, 0.0
  %v97 = vsel %vm95, %v88, 0.0
  %v98 = vsel %vm94, %v91, 0.0
  %v99 = vsel %vm95, %v89, 0.0
  %100 = vrot.lane.b32.xlu0 %v69, 127
  %v101 = vpop.permute.xlu0 %100
  %102 = vrot.lane.b32.xlu0 %v71, 127
  %v103 = vpop.permute.xlu0 %102
  %104 = vrot.lane.b32.xlu0 %v70, 127
  %v105 = vpop.permute.xlu0 %104
  %106 = vrot.lane.b32.xlu0 %v72, 127
  %v107 = vpop.permute.xlu0 %106
  %vm108 = vcmp.lt.s32.totalorder %v30, 127
  %v109 = vsel %vm108, %v101, %v105
  %v110 = vsel %vm108, %v103, %v107
  %v111 = vsel %vm108, %v105, %v101
  %v112 = vsel %vm108, %v107, %v103
  %v113 = vsel %vm58, 1, 0
  %v114 = vsel %vm59, 1, 0
  %vm115 = vcmp.eq.s32.totalorder %v113, 1
  %vm116 = vcmp.eq.s32.totalorder %v114, 1
  %v117 = vsel %vm115, %v109, 0.0
  %v118 = vsel %vm116, %v111, 0.0
  %v119 = vsel %vm115, %v110, 0.0
  %v120 = vsel %vm116, %v112, 0.0
  %122 = vset.pattern.permute.xlu0 0
  %123 = vperm.xlu0 %122, %v60
  %v124 = vpop.permute.xlu0 %123
  %127 = vset.pattern.permute.xlu0 0
  %128 = vperm.xlu0 %127, %v61
  %v129 = vpop.permute.xlu0 %128
  %132 = vset.pattern.permute.xlu0 0
  %133 = vperm.xlu0 %132, %v62
  %v134 = vpop.permute.xlu0 %133
  %137 = vset.pattern.permute.xlu0 0
  %138 = vperm.xlu0 %137, %v63
  %v139 = vpop.permute.xlu0 %138
  %142 = vset.pattern.permute.xlu0 0
  %143 = vperm.xlu0 %142, %v64
  %v144 = vpop.permute.xlu0 %143
  %147 = vset.pattern.permute.xlu0 0
  %148 = vperm.xlu0 %147, %v65
  %v149 = vpop.permute.xlu0 %148
  %vm151 = vcmask 392192
  %v153 = vsel %vm151, %v73, 0
  %v156 = vsel %vm151, %v74, 0
  %v159 = vsel %vm151, %v75, 0
  %v162 = vsel %vm151, %v76, 0
  %v165 = vsel %vm151, %v77, 0
  %v168 = vsel %vm151, %v78, 0
  %170 = vmatprep.subr.mxu0 %v97
  %171 = vmatpush1.msra.mxu0 %v96
  %172 = vmatprep.subr.mxu0 %v99
  %173 = vmatpush1.msra.mxu0 %v98
  %174 = vmatprep.subr.mxu0 %v70
  %175 = vmatpush1.msra.mxu0 %v69
  %176 = vmatprep.subr.mxu0 %v72
  %177 = vmatpush1.msra.mxu0 %v71
  %178 = vmatprep.subr.mxu0 %v118
  %179 = vmatpush1.msra.mxu0 %v117
  %180 = vmatprep.subr.mxu0 %v120
  %181 = vmatpush1.msra.mxu0 %v119
  %182 = vmatprep.subr.mxu0 0.0
  %183 = vmatpush1.msra.mxu0 0.0
  %184 = vmatprep.subr.mxu0 0.0
  %185 = vmatpush1.msra.mxu0 0.0
  %186 = vmatprep.subr.mxu0 0.0
  %187 = vmatpush1.msra.mxu0 0.0
  %188 = vmatprep.subr.mxu0 0.0
  %189 = vmatpush1.msra.mxu0 0.0
  %190 = vmatprep.subr.mxu0 0.0
  %191 = vmatpush1.msra.mxu0 0.0
  %192 = vmatprep.subr.mxu0 0.0
  %193 = vmatpush1.msra.mxu0 0.0
  %194 = vmatprep.subr.mxu0 0.0
  %195 = vmatpush1.msra.mxu0 0.0
  %196 = vmatprep.subr.mxu0 0.0
  %197 = vmatpush1.msra.mxu0 0.0
  %198 = vmatprep.subr.mxu0 0.0
  %199 = vmatpush1.msra.mxu0 0.0
  %200 = vmatprep.subr.mxu0 0.0
  %201 = vmatpush1.msra.mxu0 0.0
  %202 = vmatprep.subr.mxu0 0.0
  %203 = vmatpush1.msra.mxu0 0.0
  %204 = vmatprep.subr.mxu0 0.0
  %205 = vmatpush1.msra.mxu0 0.0
  %206 = vmatprep.subr.mxu0 0.0
  %207 = vmatpush1.msra.mxu0 0.0
  %208 = vmatprep.subr.mxu0 0.0
  %209 = vmatpush1.msra.mxu0 0.0
  %210 = vmatprep.subr.mxu0 0.0
  %211 = vmatpush1.msra.mxu0 0.0
  %212 = vmatprep.subr.mxu0 0.0
  %213 = vmatpush1.msra.mxu0 0.0
  %214 = vmatprep.subr.mxu0 0.0
  %215 = vmatpush1.msra.mxu0 0.0
  %216 = vmatprep.subr.mxu0 0.0
  %217 = vmatpush1.msra.mxu0 0.0
  %218 = vmatprep.subr.mxu0 0.0
  %219 = vmatpush1.msra.mxu0 0.0
  %220 = vmatprep.subr.mxu0 0.0
  %221 = vmatpush1.msra.mxu0 0.0
  %222 = vmatprep.subr.mxu0 0.0
  %223 = vmatpush1.msra.mxu0 0.0
  %224 = vmatprep.subr.mxu0 0.0
  %225 = vmatpush1.msra.mxu0 0.0
  %226 = vmatprep.subr.mxu0 0.0
  %227 = vmatpush1.msra.mxu0 0.0
  %228 = vmatprep.subr.mxu0 0.0
  %229 = vmatpush1.msra.mxu0 0.0
  %230 = vmatprep.subr.mxu0 0.0
  %231 = vmatpush1.msra.mxu0 0.0
  %232 = vmatprep.subr.mxu0 0.0
  %233 = vmatpush1.msra.mxu0 0.0
  %234 = vmatprep.mubr.f32.mxu0 0.0
  %235 = vmatmul.mubr.f32.gmra.mrb[0].mxu0 %v153
  %v236 = vpop.f32.mrb[0].mxu0
  %v237 = vadd.f32 %v124, %v236
  %v238 = vpop.f32.mrb[0].mxu0
  %v239 = vadd.f32 %v124, %v238
  %240 = vmatprep.mubr.f32.mxu0 0.0
  %241 = vmatmul.mubr.f32.gmra.mrb[0].mxu0 %v156
  %v242 = vpop.f32.mrb[0].mxu0
  %v243 = vadd.f32 %v129, %v242
  %v244 = vpop.f32.mrb[0].mxu0
  %v245 = vadd.f32 %v129, %v244
  %246 = vmatprep.mubr.f32.mxu0 0.0
  %247 = vmatmul.mubr.f32.gmra.mrb[0].mxu0 %v159
  %v248 = vpop.f32.mrb[0].mxu0
  %v249 = vadd.f32 %v134, %v248
  %v250 = vpop.f32.mrb[0].mxu0
  %v251 = vadd.f32 %v134, %v250
  %252 = vmatprep.mubr.f32.mxu0 0.0
  %253 = vmatmul.mubr.f32.gmra.mrb[0].mxu0 %v162
  %v254 = vpop.f32.mrb[0].mxu0
  %v255 = vadd.f32 %v139, %v254
  %v256 = vpop.f32.mrb[0].mxu0
  %v257 = vadd.f32 %v139, %v256
  %258 = vmatprep.mubr.f32.mxu0 0.0
  %259 = vmatmul.mubr.f32.gmra.mrb[0].mxu0 %v165
  %v260 = vpop.f32.mrb[0].mxu0
  %v261 = vadd.f32 %v144, %v260
  %v262 = vpop.f32.mrb[0].mxu0
  %v263 = vadd.f32 %v144, %v262
  %264 = vmatprep.mubr.f32.mxu0 0.0
  %265 = vmatmul.mubr.f32.gmra.mrb[0].mxu0 %v168
  %v266 = vpop.f32.mrb[0].mxu0
  %v267 = vadd.f32 %v149, %v266
  %v268 = vpop.f32.mrb[0].mxu0
  %v269 = vadd.f32 %v149, %v268
  %270 = vdwg.mxu0
  %v271 = vld [vmem:[%s2] sm:$0xff]
  %v272 = vld [vmem:[%s2 + $0x8] sm:$0xff]
  %v273 = vld [vmem:[%s2 + $0x10] sm:$0xff]
  %v274 = vld [vmem:[%s2 + $0x18] sm:$0xff]
  %v275 = vld [vmem:[%s2 + $0x20] sm:$0xff]
  %v276 = vld [vmem:[%s2 + $0x28] sm:$0xff]
  %v277 = vld [vmem:[%s2 + $0x30] sm:$0xff]
  %v278 = vld [vmem:[%s2 + $0x38] sm:$0xff]
  %v279 = vld [vmem:[%s2 + $0x40] sm:$0xff]
  %v280 = vld [vmem:[%s2 + $0x48] sm:$0xff]
  %v281 = vld [vmem:[%s2 + $0x50] sm:$0xff]
  %v282 = vld [vmem:[%s2 + $0x58] sm:$0xff]
  %v283 = vld [vmem:[%s2 + $0x60] sm:$0xff]
  %v284 = vld [vmem:[%s2 + $0x68] sm:$0xff]
  %v285 = vld [vmem:[%s2 + $0x70] sm:$0xff]
  %v286 = vld [vmem:[%s2 + $0x78] sm:$0xff]
  %v287 = vld [vmem:[%s2 + $0x80] sm:$0xff]
  %v288 = vld [vmem:[%s2 + $0x88] sm:$0xff]
  %289 = vrot.lane.b32.xlu0 %v237, 1
  %v290 = vpop.permute.xlu0 %289
  %291 = vrot.lane.b32.xlu0 %v243, 1
  %v292 = vpop.permute.xlu0 %291
  %293 = vrot.lane.b32.xlu0 %v249, 1
  %v294 = vpop.permute.xlu0 %293
  %295 = vrot.lane.b32.xlu0 %v255, 1
  %v296 = vpop.permute.xlu0 %295
  %297 = vrot.lane.b32.xlu0 %v261, 1
  %v298 = vpop.permute.xlu0 %297
  %299 = vrot.lane.b32.xlu0 %v267, 1
  %v300 = vpop.permute.xlu0 %299
  %301 = vrot.lane.b32.xlu0 %v239, 1
  %v302 = vpop.permute.xlu0 %301
  %303 = vrot.lane.b32.xlu0 %v245, 1
  %v304 = vpop.permute.xlu0 %303
  %305 = vrot.lane.b32.xlu0 %v251, 1
  %v306 = vpop.permute.xlu0 %305
  %307 = vrot.lane.b32.xlu0 %v257, 1
  %v308 = vpop.permute.xlu0 %307
  %309 = vrot.lane.b32.xlu0 %v263, 1
  %v310 = vpop.permute.xlu0 %309
  %311 = vrot.lane.b32.xlu0 %v269, 1
  %v312 = vpop.permute.xlu0 %311
  %v313 = vsel %vm87, %v290, %v302
  %v314 = vsel %vm87, %v292, %v304
  %v315 = vsel %vm87, %v294, %v306
  %v316 = vsel %vm87, %v296, %v308
  %v317 = vsel %vm87, %v298, %v310
  %v318 = vsel %vm87, %v300, %v312
  %v319 = vsel %vm87, %v302, %v290
  %v320 = vsel %vm87, %v304, %v292
  %v321 = vsel %vm87, %v306, %v294
  %v322 = vsel %vm87, %v308, %v296
  %v323 = vsel %vm87, %v310, %v298
  %v324 = vsel %vm87, %v312, %v300
  %v325 = vsel %vm94, %v319, 0.0
  %v326 = vsel %vm95, %v313, 0.0
  %v327 = vsel %vm94, %v320, 0.0
  %v328 = vsel %vm95, %v314, 0.0
  %v329 = vsel %vm94, %v321, 0.0
  %v330 = vsel %vm95, %v315, 0.0
  %v331 = vsel %vm94, %v322, 0.0
  %v332 = vsel %vm95, %v316, 0.0
  %v333 = vsel %vm94, %v323, 0.0
  %v334 = vsel %vm95, %v317, 0.0
  %v335 = vsel %vm94, %v324, 0.0
  %v336 = vsel %vm95, %v318, 0.0
  %337 = vrot.lane.b32.xlu0 %v237, 127
  %v338 = vpop.permute.xlu0 %337
  %339 = vrot.lane.b32.xlu0 %v243, 127
  %v340 = vpop.permute.xlu0 %339
  %341 = vrot.lane.b32.xlu0 %v249, 127
  %v342 = vpop.permute.xlu0 %341
  %343 = vrot.lane.b32.xlu0 %v255, 127
  %v344 = vpop.permute.xlu0 %343
  %345 = vrot.lane.b32.xlu0 %v261, 127
  %v346 = vpop.permute.xlu0 %345
  %347 = vrot.lane.b32.xlu0 %v267, 127
  %v348 = vpop.permute.xlu0 %347
  %349 = vrot.lane.b32.xlu0 %v239, 127
  %v350 = vpop.permute.xlu0 %349
  %351 = vrot.lane.b32.xlu0 %v245, 127
  %v352 = vpop.permute.xlu0 %351
  %353 = vrot.lane.b32.xlu0 %v251, 127
  %v354 = vpop.permute.xlu0 %353
  %355 = vrot.lane.b32.xlu0 %v257, 127
  %v356 = vpop.permute.xlu0 %355
  %357 = vrot.lane.b32.xlu0 %v263, 127
  %v358 = vpop.permute.xlu0 %357
  %359 = vrot.lane.b32.xlu0 %v269, 127
  %v360 = vpop.permute.xlu0 %359
  %v361 = vsel %vm108, %v338, %v350
  %v362 = vsel %vm108, %v340, %v352
  %v363 = vsel %vm108, %v342, %v354
  %v364 = vsel %vm108, %v344, %v356
  %v365 = vsel %vm108, %v346, %v358
  %v366 = vsel %vm108, %v348, %v360
  %v367 = vsel %vm108, %v350, %v338
  %v368 = vsel %vm108, %v352, %v340
  %v369 = vsel %vm108, %v354, %v342
  %v370 = vsel %vm108, %v356, %v344
  %v371 = vsel %vm108, %v358, %v346
  %v372 = vsel %vm108, %v360, %v348
  %v373 = vsel %vm115, %v361, 0.0
  %v374 = vsel %vm116, %v367, 0.0
  %v375 = vsel %vm115, %v362, 0.0
  %v376 = vsel %vm116, %v368, 0.0
  %v377 = vsel %vm115, %v363, 0.0
  %v378 = vsel %vm116, %v369, 0.0
  %v379 = vsel %vm115, %v364, 0.0
  %v380 = vsel %vm116, %v370, 0.0
  %v381 = vsel %vm115, %v365, 0.0
  %v382 = vsel %vm116, %v371, 0.0
  %v383 = vsel %vm115, %v366, 0.0
  %v384 = vsel %vm116, %v372, 0.0
  %385 = vset.pattern.permute.xlu0 1
  %386 = vperm.xlu0 %385, %v60
  %v387 = vpop.permute.xlu0 %386
  %389 = vset.pattern.permute.xlu0 1
  %390 = vperm.xlu0 %389, %v61
  %v391 = vpop.permute.xlu0 %390
  %393 = vset.pattern.permute.xlu0 1
  %394 = vperm.xlu0 %393, %v62
  %v395 = vpop.permute.xlu0 %394
  %397 = vset.pattern.permute.xlu0 1
  %398 = vperm.xlu0 %397, %v63
  %v399 = vpop.permute.xlu0 %398
  %401 = vset.pattern.permute.xlu0 1
  %402 = vperm.xlu0 %401, %v64
  %v403 = vpop.permute.xlu0 %402
  %405 = vset.pattern.permute.xlu0 1
  %406 = vperm.xlu0 %405, %v65
  %v407 = vpop.permute.xlu0 %406
  %410 = vset.pattern.permute.xlu0 1
  %411 = vperm.xlu0 %410, %v66
  %v412 = vpop.permute.xlu0 %411
  %415 = vset.pattern.permute.xlu0 1
  %416 = vperm.xlu0 %415, %v67
  %v417 = vpop.permute.xlu0 %416
  %420 = vset.pattern.permute.xlu0 1
  %421 = vperm.xlu0 %420, %v68
  %v422 = vpop.permute.xlu0 %421
  %vm424 = vcmask 130048
  %v426 = vsel %vm424, %v272, 0
  %v429 = vsel %vm424, %v274, 0
  %v432 = vsel %vm424, %v276, 0
  %v435 = vsel %vm424, %v278, 0
  %v438 = vsel %vm424, %v280, 0
  %v441 = vsel %vm424, %v282, 0
  %v444 = vsel %vm424, %v284, 0
  %v447 = vsel %vm424, %v286, 0
  %v450 = vsel %vm424, %v288, 0
  %452 = vmatprep.subr.mxu0 %v326
  %453 = vmatpush1.msra.mxu0 %v325
  %454 = vmatprep.subr.mxu0 %v328
  %455 = vmatpush1.msra.mxu0 %v327
  %456 = vmatprep.subr.mxu0 %v330
  %457 = vmatpush1.msra.mxu0 %v329
  %458 = vmatprep.subr.mxu0 %v332
  %459 = vmatpush1.msra.mxu0 %v331
  %460 = vmatprep.subr.mxu0 %v334
  %461 = vmatpush1.msra.mxu0 %v333
  %462 = vmatprep.subr.mxu0 %v336
  %463 = vmatpush1.msra.mxu0 %v335
  %464 = vmatprep.subr.mxu0 %v239
  %465 = vmatpush1.msra.mxu0 %v237
  %466 = vmatprep.subr.mxu0 %v245
  %467 = vmatpush1.msra.mxu0 %v243
  %468 = vmatprep.subr.mxu0 %v251
  %469 = vmatpush1.msra.mxu0 %v249
  %470 = vmatprep.subr.mxu0 %v257
  %471 = vmatpush1.msra.mxu0 %v255
  %472 = vmatprep.subr.mxu0 %v263
  %473 = vmatpush1.msra.mxu0 %v261
  %474 = vmatprep.subr.mxu0 %v269
  %475 = vmatpush1.msra.mxu0 %v267
  %476 = vmatprep.subr.mxu0 %v374
  %477 = vmatpush1.msra.mxu0 %v373
  %478 = vmatprep.subr.mxu0 %v376
  %479 = vmatpush1.msra.mxu0 %v375
  %480 = vmatprep.subr.mxu0 %v378
  %481 = vmatpush1.msra.mxu0 %v377
  %482 = vmatprep.subr.mxu0 %v380
  %483 = vmatpush1.msra.mxu0 %v379
  %484 = vmatprep.subr.mxu0 %v382
  %485 = vmatpush1.msra.mxu0 %v381
  %486 = vmatprep.subr.mxu0 %v384
  %487 = vmatpush1.msra.mxu0 %v383
  %488 = vmatprep.subr.mxu0 0.0
  %489 = vmatpush1.msra.mxu0 0.0
  %490 = vmatprep.subr.mxu0 0.0
  %491 = vmatpush1.msra.mxu0 0.0
  %492 = vmatprep.subr.mxu0 0.0
  %493 = vmatpush1.msra.mxu0 0.0
  %494 = vmatprep.subr.mxu0 0.0
  %495 = vmatpush1.msra.mxu0 0.0
  %496 = vmatprep.subr.mxu0 0.0
  %497 = vmatpush1.msra.mxu0 0.0
  %498 = vmatprep.subr.mxu0 0.0
  %499 = vmatpush1.msra.mxu0 0.0
  %500 = vmatprep.subr.mxu0 0.0
  %501 = vmatpush1.msra.mxu0 0.0
  %502 = vmatprep.subr.mxu0 0.0
  %503 = vmatpush1.msra.mxu0 0.0
  %504 = vmatprep.subr.mxu0 0.0
  %505 = vmatpush1.msra.mxu0 0.0
  %506 = vmatprep.subr.mxu0 0.0
  %507 = vmatpush1.msra.mxu0 0.0
  %508 = vmatprep.subr.mxu0 0.0
  %509 = vmatpush1.msra.mxu0 0.0
  %510 = vmatprep.subr.mxu0 0.0
  %511 = vmatpush1.msra.mxu0 0.0
  %512 = vmatprep.subr.mxu0 0.0
  %513 = vmatpush1.msra.mxu0 0.0
  %514 = vmatprep.subr.mxu0 0.0
  %515 = vmatpush1.msra.mxu0 0.0
  %516 = vmatprep.mubr.f32.mxu0 %v426
  %517 = vmatmul.mubr.f32.gmra.mrb[0].mxu0 %v271
  %v518 = vpop.f32.mrb[0].mxu0
  %v519 = vadd.f32 %v387, %v518
  %v520 = vpop.f32.mrb[0].mxu0
  %v521 = vadd.f32 %v387, %v520
  %522 = vmatprep.mubr.f32.mxu0 %v429
  %523 = vmatmul.mubr.f32.gmra.mrb[0].mxu0 %v273
  %v524 = vpop.f32.mrb[0].mxu0
  %v525 = vadd.f32 %v391, %v524
  %v526 = vpop.f32.mrb[0].mxu0
  %v527 = vadd.f32 %v391, %v526
  %528 = vmatprep.mubr.f32.mxu0 %v432
  %529 = vmatmul.mubr.f32.gmra.mrb[0].mxu0 %v275
  %v530 = vpop.f32.mrb[0].mxu0
  %v531 = vadd.f32 %v395, %v530
  %v532 = vpop.f32.mrb[0].mxu0
  %v533 = vadd.f32 %v395, %v532
  %534 = vmatprep.mubr.f32.mxu0 %v435
  %535 = vmatmul.mubr.f32.gmra.mrb[0].mxu0 %v277
  %v536 = vpop.f32.mrb[0].mxu0
  %v537 = vadd.f32 %v399, %v536
  %v538 = vpop.f32.mrb[0].mxu0
  %v539 = vadd.f32 %v399, %v538
  %540 = vmatprep.mubr.f32.mxu0 %v438
  %541 = vmatmul.mubr.f32.gmra.mrb[0].mxu0 %v279
  %v542 = vpop.f32.mrb[0].mxu0
  %v543 = vadd.f32 %v403, %v542
  %v544 = vpop.f32.mrb[0].mxu0
  %v545 = vadd.f32 %v403, %v544
  %546 = vmatprep.mubr.f32.mxu0 %v441
  %547 = vmatmul.mubr.f32.gmra.mrb[0].mxu0 %v281
  %v548 = vpop.f32.mrb[0].mxu0
  %v549 = vadd.f32 %v407, %v548
  %v550 = vpop.f32.mrb[0].mxu0
  %v551 = vadd.f32 %v407, %v550
  %552 = vmatprep.mubr.f32.mxu0 %v444
  %553 = vmatmul.mubr.f32.gmra.mrb[0].mxu0 %v283
  %v554 = vpop.f32.mrb[0].mxu0
  %v555 = vadd.f32 %v412, %v554
  %v556 = vpop.f32.mrb[0].mxu0
  %v557 = vadd.f32 %v412, %v556
  %558 = vmatprep.mubr.f32.mxu0 %v447
  %559 = vmatmul.mubr.f32.gmra.mrb[0].mxu0 %v285
  %v560 = vpop.f32.mrb[0].mxu0
  %v561 = vadd.f32 %v417, %v560
  %v562 = vpop.f32.mrb[0].mxu0
  %v563 = vadd.f32 %v417, %v562
  %564 = vmatprep.mubr.f32.mxu0 %v450
  %565 = vmatmul.mubr.f32.gmra.mrb[0].mxu0 %v287
  %v566 = vpop.f32.mrb[0].mxu0
  %v567 = vadd.f32 %v422, %v566
  %v568 = vpop.f32.mrb[0].mxu0
  %v569 = vadd.f32 %v422, %v568
  %570 = vdwg.mxu0
  %v571 = vadd.f32 %v519, %v521
  %572 = vadd.xlane.f32.xlu0 %v571
  %v573 = vpop.xlane.xlu0 %572
  %v574 = vadd.f32 %v525, %v527
  %575 = vadd.xlane.f32.xlu0 %v574
  %v576 = vpop.xlane.xlu0 %575
  %v577 = vadd.f32 %v531, %v533
  %578 = vadd.xlane.f32.xlu0 %v577
  %v579 = vpop.xlane.xlu0 %578
  %v580 = vadd.f32 %v537, %v539
  %581 = vadd.xlane.f32.xlu0 %v580
  %v582 = vpop.xlane.xlu0 %581
  %v583 = vadd.f32 %v543, %v545
  %584 = vadd.xlane.f32.xlu0 %v583
  %v585 = vpop.xlane.xlu0 %584
  %v586 = vadd.f32 %v549, %v551
  %587 = vadd.xlane.f32.xlu0 %v586
  %v588 = vpop.xlane.xlu0 %587
  %v589 = vadd.f32 %v555, %v557
  %590 = vadd.xlane.f32.xlu0 %v589
  %v591 = vpop.xlane.xlu0 %590
  %v592 = vadd.f32 %v561, %v563
  %593 = vadd.xlane.f32.xlu0 %v592
  %v594 = vpop.xlane.xlu0 %593
  %v595 = vadd.f32 %v567, %v569
  %596 = vadd.xlane.f32.xlu0 %v595
  %v597 = vpop.xlane.xlu0 %596
  %v598 = vrcp.pop 256.0
  %v599 = vmul.f32 %v573, %v598
  %v600 = vmul.f32 %v576, %v598
  %v601 = vmul.f32 %v579, %v598
  %v602 = vmul.f32 %v582, %v598
  %v603 = vmul.f32 %v585, %v598
  %v604 = vmul.f32 %v588, %v598
  %v605 = vmul.f32 %v591, %v598
  %v606 = vmul.f32 %v594, %v598
  %v607 = vmul.f32 %v597, %v598
  %v608 = vsub.f32 %v519, %v599
  %v609 = vsub.f32 %v521, %v599
  %v610 = vsub.f32 %v525, %v600
  %v611 = vsub.f32 %v527, %v600
  %v612 = vsub.f32 %v531, %v601
  %v613 = vsub.f32 %v533, %v601
  %v614 = vsub.f32 %v537, %v602
  %v615 = vsub.f32 %v539, %v602
  %v616 = vsub.f32 %v543, %v603
  %v617 = vsub.f32 %v545, %v603
  %v618 = vsub.f32 %v549, %v604
  %v619 = vsub.f32 %v551, %v604
  %v620 = vsub.f32 %v555, %v605
  %v621 = vsub.f32 %v557, %v605
  %v622 = vsub.f32 %v561, %v606
  %v623 = vsub.f32 %v563, %v606
  %v624 = vsub.f32 %v567, %v607
  %v625 = vsub.f32 %v569, %v607
  %v626 = vmul.f32 %v608, %v608
  %v627 = vmul.f32 %v609, %v609
  %v628 = vmul.f32 %v610, %v610
  %v629 = vmul.f32 %v611, %v611
  %v630 = vmul.f32 %v612, %v612
  %v631 = vmul.f32 %v613, %v613
  %v632 = vmul.f32 %v614, %v614
  %v633 = vmul.f32 %v615, %v615
  %v634 = vmul.f32 %v616, %v616
  %v635 = vmul.f32 %v617, %v617
  %v636 = vmul.f32 %v618, %v618
  %v637 = vmul.f32 %v619, %v619
  %v638 = vmul.f32 %v620, %v620
  %v639 = vmul.f32 %v621, %v621
  %v640 = vmul.f32 %v622, %v622
  %v641 = vmul.f32 %v623, %v623
  %v642 = vmul.f32 %v624, %v624
  %v643 = vmul.f32 %v625, %v625
  %v644 = vadd.f32 %v626, %v627
  %645 = vadd.xlane.f32.xlu0 %v644
  %v646 = vpop.xlane.xlu0 %645
  %v647 = vadd.f32 %v628, %v629
  %648 = vadd.xlane.f32.xlu0 %v647
  %v649 = vpop.xlane.xlu0 %648
  %v650 = vadd.f32 %v630, %v631
  %651 = vadd.xlane.f32.xlu0 %v650
  %v652 = vpop.xlane.xlu0 %651
  %v653 = vadd.f32 %v632, %v633
  %654 = vadd.xlane.f32.xlu0 %v653
  %v655 = vpop.xlane.xlu0 %654
  %v656 = vadd.f32 %v634, %v635
  %657 = vadd.xlane.f32.xlu0 %v656
  %v658 = vpop.xlane.xlu0 %657
  %v659 = vadd.f32 %v636, %v637
  %660 = vadd.xlane.f32.xlu0 %v659
  %v661 = vpop.xlane.xlu0 %660
  %v662 = vadd.f32 %v638, %v639
  %663 = vadd.xlane.f32.xlu0 %v662
  %v664 = vpop.xlane.xlu0 %663
  %v665 = vadd.f32 %v640, %v641
  %666 = vadd.xlane.f32.xlu0 %v665
  %v667 = vpop.xlane.xlu0 %666
  %v668 = vadd.f32 %v642, %v643
  %669 = vadd.xlane.f32.xlu0 %v668
  %v670 = vpop.xlane.xlu0 %669
  %v671 = vmul.f32 %v646, %v598
  %v672 = vmul.f32 %v649, %v598
  %v673 = vmul.f32 %v652, %v598
  %v674 = vmul.f32 %v655, %v598
  %v675 = vmul.f32 %v658, %v598
  %v676 = vmul.f32 %v661, %v598
  %v677 = vmul.f32 %v664, %v598
  %v678 = vmul.f32 %v667, %v598
  %v679 = vmul.f32 %v670, %v598
  %v680 = vadd.f32 %v671, 1e-05
  %v681 = vadd.f32 %v672, 1e-05
  %v682 = vadd.f32 %v673, 1e-05
  %v683 = vadd.f32 %v674, 1e-05
  %v684 = vadd.f32 %v675, 1e-05
  %v685 = vadd.f32 %v676, 1e-05
  %v686 = vadd.f32 %v677, 1e-05
  %v687 = vadd.f32 %v678, 1e-05
  %v688 = vadd.f32 %v679, 1e-05
  %v689 = vrsqrt.pop %v680
  %v690 = vrsqrt.pop %v681
  %v691 = vrsqrt.pop %v682
  %v692 = vrsqrt.pop %v683
  %v693 = vrsqrt.pop %v684
  %v694 = vrsqrt.pop %v685
  %v695 = vrsqrt.pop %v686
  %v696 = vrsqrt.pop %v687
  %v697 = vrsqrt.pop %v688
  %v698 = vmul.f32 %v60, %v689
  %v699 = vmul.f32 %v61, %v690
  %v700 = vmul.f32 %v62, %v691
  %v701 = vmul.f32 %v63, %v692
  %v702 = vmul.f32 %v64, %v693
  %v703 = vmul.f32 %v65, %v694
  %v704 = vmul.f32 %v66, %v695
  %v705 = vmul.f32 %v67, %v696
  %v706 = vmul.f32 %v68, %v697
  %708 = vset.pattern.permute.xlu0 2
  %709 = vperm.xlu0 %708, %v698
  %v710 = vpop.permute.xlu0 %709
  %713 = vset.pattern.permute.xlu0 2
  %714 = vperm.xlu0 %713, %v699
  %v715 = vpop.permute.xlu0 %714
  %718 = vset.pattern.permute.xlu0 2
  %719 = vperm.xlu0 %718, %v700
  %v720 = vpop.permute.xlu0 %719
  %723 = vset.pattern.permute.xlu0 2
  %724 = vperm.xlu0 %723, %v701
  %v725 = vpop.permute.xlu0 %724
  %728 = vset.pattern.permute.xlu0 2
  %729 = vperm.xlu0 %728, %v702
  %v730 = vpop.permute.xlu0 %729
  %733 = vset.pattern.permute.xlu0 2
  %734 = vperm.xlu0 %733, %v703
  %v735 = vpop.permute.xlu0 %734
  %738 = vset.pattern.permute.xlu0 2
  %739 = vperm.xlu0 %738, %v704
  %v740 = vpop.permute.xlu0 %739
  %743 = vset.pattern.permute.xlu0 2
  %744 = vperm.xlu0 %743, %v705
  %v745 = vpop.permute.xlu0 %744
  %748 = vset.pattern.permute.xlu0 2
  %749 = vperm.xlu0 %748, %v706
  %v750 = vpop.permute.xlu0 %749
  %v752 = vmul.f32 %v519, %v710
  %v753 = vmul.f32 %v521, %v710
  %v754 = vmul.f32 %v525, %v715
  %v755 = vmul.f32 %v527, %v715
  %v756 = vmul.f32 %v531, %v720
  %v757 = vmul.f32 %v533, %v720
  %v758 = vmul.f32 %v537, %v725
  %v759 = vmul.f32 %v539, %v725
  %v760 = vmul.f32 %v543, %v730
  %v761 = vmul.f32 %v545, %v730
  %v762 = vmul.f32 %v549, %v735
  %v763 = vmul.f32 %v551, %v735
  %v764 = vmul.f32 %v555, %v740
  %v765 = vmul.f32 %v557, %v740
  %v766 = vmul.f32 %v561, %v745
  %v767 = vmul.f32 %v563, %v745
  %v768 = vmul.f32 %v567, %v750
  %v769 = vmul.f32 %v569, %v750
  %v770 = vmul.f32 %v599, %v698
  %v771 = vmul.f32 %v600, %v699
  %v772 = vmul.f32 %v601, %v700
  %v773 = vmul.f32 %v602, %v701
  %v774 = vmul.f32 %v603, %v702
  %v775 = vmul.f32 %v604, %v703
  %v776 = vmul.f32 %v605, %v704
  %v777 = vmul.f32 %v606, %v705
  %v778 = vmul.f32 %v607, %v706
  %788 = vrot.lane.b32.xlu0 %v770, 1
  %v789 = vpop.permute.xlu0 %788
  %790 = vrot.lane.b32.xlu0 %v771, 1
  %v791 = vpop.permute.xlu0 %790
  %792 = vrot.lane.b32.xlu0 %v772, 1
  %v793 = vpop.permute.xlu0 %792
  %794 = vrot.lane.b32.xlu0 %v773, 1
  %v795 = vpop.permute.xlu0 %794
  %796 = vrot.lane.b32.xlu0 %v774, 1
  %v797 = vpop.permute.xlu0 %796
  %798 = vrot.lane.b32.xlu0 %v775, 1
  %v799 = vpop.permute.xlu0 %798
  %800 = vrot.lane.b32.xlu0 %v776, 1
  %v801 = vpop.permute.xlu0 %800
  %802 = vrot.lane.b32.xlu0 %v777, 1
  %v803 = vpop.permute.xlu0 %802
  %804 = vrot.lane.b32.xlu0 %v778, 1
  %v805 = vpop.permute.xlu0 %804
  %v815 = vsub.f32 %v60, %v789
  %v816 = vsub.f32 %v61, %v791
  %v817 = vsub.f32 %v62, %v793
  %v818 = vsub.f32 %v63, %v795
  %v819 = vsub.f32 %v64, %v797
  %v820 = vsub.f32 %v65, %v799
  %v821 = vsub.f32 %v66, %v801
  %v822 = vsub.f32 %v67, %v803
  %v823 = vsub.f32 %v68, %v805
  %825 = vset.pattern.permute.xlu0 3
  %826 = vperm.xlu0 %825, %v815
  %v827 = vpop.permute.xlu0 %826
  %830 = vset.pattern.permute.xlu0 3
  %831 = vperm.xlu0 %830, %v816
  %v832 = vpop.permute.xlu0 %831
  %835 = vset.pattern.permute.xlu0 3
  %836 = vperm.xlu0 %835, %v817
  %v837 = vpop.permute.xlu0 %836
  %840 = vset.pattern.permute.xlu0 3
  %841 = vperm.xlu0 %840, %v818
  %v842 = vpop.permute.xlu0 %841
  %845 = vset.pattern.permute.xlu0 3
  %846 = vperm.xlu0 %845, %v819
  %v847 = vpop.permute.xlu0 %846
  %850 = vset.pattern.permute.xlu0 3
  %851 = vperm.xlu0 %850, %v820
  %v852 = vpop.permute.xlu0 %851
  %855 = vset.pattern.permute.xlu0 3
  %856 = vperm.xlu0 %855, %v821
  %v857 = vpop.permute.xlu0 %856
  %860 = vset.pattern.permute.xlu0 3
  %861 = vperm.xlu0 %860, %v822
  %v862 = vpop.permute.xlu0 %861
  %865 = vset.pattern.permute.xlu0 3
  %866 = vperm.xlu0 %865, %v823
  %v867 = vpop.permute.xlu0 %866
  %v869 = vadd.f32 %v752, %v827
  %v870 = vadd.f32 %v753, %v827
  %v871 = vadd.f32 %v754, %v832
  %v872 = vadd.f32 %v755, %v832
  %v873 = vadd.f32 %v756, %v837
  %v874 = vadd.f32 %v757, %v837
  %v875 = vadd.f32 %v758, %v842
  %v876 = vadd.f32 %v759, %v842
  %v877 = vadd.f32 %v760, %v847
  %v878 = vadd.f32 %v761, %v847
  %v879 = vadd.f32 %v762, %v852
  %v880 = vadd.f32 %v763, %v852
  %v881 = vadd.f32 %v764, %v857
  %v882 = vadd.f32 %v765, %v857
  %v883 = vadd.f32 %v766, %v862
  %v884 = vadd.f32 %v767, %v862
  %v885 = vadd.f32 %v768, %v867
  %v886 = vadd.f32 %v769, %v867
  %v887 = vmax.f32 %v869, 0.0
  %v888 = vmax.f32 %v870, 0.0
  %v889 = vmax.f32 %v871, 0.0
  %v890 = vmax.f32 %v872, 0.0
  %v891 = vmax.f32 %v873, 0.0
  %v892 = vmax.f32 %v874, 0.0
  %v893 = vmax.f32 %v875, 0.0
  %v894 = vmax.f32 %v876, 0.0
  %v895 = vmax.f32 %v877, 0.0
  %v896 = vmax.f32 %v878, 0.0
  %v897 = vmax.f32 %v879, 0.0
  %v898 = vmax.f32 %v880, 0.0
  %v899 = vmax.f32 %v881, 0.0
  %v900 = vmax.f32 %v882, 0.0
  %v901 = vmax.f32 %v883, 0.0
  %v902 = vmax.f32 %v884, 0.0
  %v903 = vmax.f32 %v885, 0.0
  %v904 = vmax.f32 %v886, 0.0
  %v905 = vld [vmem:[%s3] sm:$0xff]
  %v906 = vld [vmem:[%s3 + $0x8] sm:$0xff]
  %v907 = vld [vmem:[%s3 + $0x10] sm:$0xff]
  %908 = vset.pattern.permute.xlu0 4
  %909 = vperm.xlu0 %908, %v60
  %v910 = vpop.permute.xlu0 %909
  %912 = vset.pattern.permute.xlu0 4
  %913 = vperm.xlu0 %912, %v61
  %v914 = vpop.permute.xlu0 %913
  %916 = vset.pattern.permute.xlu0 4
  %917 = vperm.xlu0 %916, %v62
  %v918 = vpop.permute.xlu0 %917
  %vm920 = vcmask 588800
  %v922 = vsel %vm920, %v905, 0
  %v925 = vsel %vm920, %v906, 0
  %v928 = vsel %vm920, %v907, 0
  %930 = vmatprep.subr.mxu0 %v888
  %931 = vmatpush1.msra.mxu0 %v887
  %932 = vmatprep.subr.mxu0 %v890
  %933 = vmatpush1.msra.mxu0 %v889
  %934 = vmatprep.subr.mxu0 %v892
  %935 = vmatpush1.msra.mxu0 %v891
  %936 = vmatprep.subr.mxu0 %v894
  %937 = vmatpush1.msra.mxu0 %v893
  %938 = vmatprep.subr.mxu0 %v896
  %939 = vmatpush1.msra.mxu0 %v895
  %940 = vmatprep.subr.mxu0 %v898
  %941 = vmatpush1.msra.mxu0 %v897
  %942 = vmatprep.subr.mxu0 %v900
  %943 = vmatpush1.msra.mxu0 %v899
  %944 = vmatprep.subr.mxu0 %v902
  %945 = vmatpush1.msra.mxu0 %v901
  %946 = vmatprep.subr.mxu0 %v904
  %947 = vmatpush1.msra.mxu0 %v903
  %948 = vmatprep.subr.mxu0 0.0
  %949 = vmatpush1.msra.mxu0 0.0
  %950 = vmatprep.subr.mxu0 0.0
  %951 = vmatpush1.msra.mxu0 0.0
  %952 = vmatprep.subr.mxu0 0.0
  %953 = vmatpush1.msra.mxu0 0.0
  %954 = vmatprep.subr.mxu0 0.0
  %955 = vmatpush1.msra.mxu0 0.0
  %956 = vmatprep.subr.mxu0 0.0
  %957 = vmatpush1.msra.mxu0 0.0
  %958 = vmatprep.subr.mxu0 0.0
  %959 = vmatpush1.msra.mxu0 0.0
  %960 = vmatprep.subr.mxu0 0.0
  %961 = vmatpush1.msra.mxu0 0.0
  %962 = vmatprep.subr.mxu0 0.0
  %963 = vmatpush1.msra.mxu0 0.0
  %964 = vmatprep.subr.mxu0 0.0
  %965 = vmatpush1.msra.mxu0 0.0
  %966 = vmatprep.subr.mxu0 0.0
  %967 = vmatpush1.msra.mxu0 0.0
  %968 = vmatprep.subr.mxu0 0.0
  %969 = vmatpush1.msra.mxu0 0.0
  %970 = vmatprep.subr.mxu0 0.0
  %971 = vmatpush1.msra.mxu0 0.0
  %972 = vmatprep.subr.mxu0 0.0
  %973 = vmatpush1.msra.mxu0 0.0
  %974 = vmatprep.subr.mxu0 0.0
  %975 = vmatpush1.msra.mxu0 0.0
  %976 = vmatprep.subr.mxu0 0.0
  %977 = vmatpush1.msra.mxu0 0.0
  %978 = vmatprep.subr.mxu0 0.0
  %979 = vmatpush1.msra.mxu0 0.0
  %980 = vmatprep.subr.mxu0 0.0
  %981 = vmatpush1.msra.mxu0 0.0
  %982 = vmatprep.subr.mxu0 0.0
  %983 = vmatpush1.msra.mxu0 0.0
  %984 = vmatprep.subr.mxu0 0.0
  %985 = vmatpush1.msra.mxu0 0.0
  %986 = vmatprep.subr.mxu0 0.0
  %987 = vmatpush1.msra.mxu0 0.0
  %988 = vmatprep.subr.mxu0 0.0
  %989 = vmatpush1.msra.mxu0 0.0
  %990 = vmatprep.subr.mxu0 0.0
  %991 = vmatpush1.msra.mxu0 0.0
  %992 = vmatprep.subr.mxu0 0.0
  %993 = vmatpush1.msra.mxu0 0.0
  %994 = vmatprep.mubr.f32.mxu0 0.0
  %995 = vmatmul.mubr.f32.gmra.mrb[0].mxu0 %v922
  %v996 = vpop.f32.mrb[0].mxu0
  %v997 = vadd.f32 %v910, %v996
  %v998 = vpop.f32.mrb[0].mxu0
  %v999 = vadd.f32 %v910, %v998
  %1000 = vmatprep.mubr.f32.mxu0 0.0
  %1001 = vmatmul.mubr.f32.gmra.mrb[0].mxu0 %v925
  %v1002 = vpop.f32.mrb[0].mxu0
  %v1003 = vadd.f32 %v914, %v1002
  %v1004 = vpop.f32.mrb[0].mxu0
  %v1005 = vadd.f32 %v914, %v1004
  %1006 = vmatprep.mubr.f32.mxu0 0.0
  %1007 = vmatmul.mubr.f32.gmra.mrb[0].mxu0 %v928
  %v1008 = vpop.f32.mrb[0].mxu0
  %v1009 = vadd.f32 %v918, %v1008
  %v1010 = vpop.f32.mrb[0].mxu0
  %v1011 = vadd.f32 %v918, %v1010
  %1012 = vdwg.mxu0
  %v1013 = vadd.f32 %v997, %v999
  %1014 = vadd.xlane.f32.xlu0 %v1013
  %v1015 = vpop.xlane.xlu0 %1014
  %v1016 = vadd.f32 %v1003, %v1005
  %1017 = vadd.xlane.f32.xlu0 %v1016
  %v1018 = vpop.xlane.xlu0 %1017
  %v1019 = vadd.f32 %v1009, %v1011
  %1020 = vadd.xlane.f32.xlu0 %v1019
  %v1021 = vpop.xlane.xlu0 %1020
  %v1022 = vmul.f32 %v1015, %v598
  %v1023 = vmul.f32 %v1018, %v598
  %v1024 = vmul.f32 %v1021, %v598
  %v1025 = vsub.f32 %v997, %v1022
  %v1026 = vsub.f32 %v999, %v1022
  %v1027 = vsub.f32 %v1003, %v1023
  %v1028 = vsub.f32 %v1005, %v1023
  %v1029 = vsub.f32 %v1009, %v1024
  %v1030 = vsub.f32 %v1011, %v1024
  %v1031 = vmul.f32 %v1025, %v1025
  %v1032 = vmul.f32 %v1026, %v1026
  %v1033 = vmul.f32 %v1027, %v1027
  %v1034 = vmul.f32 %v1028, %v1028
  %v1035 = vmul.f32 %v1029, %v1029
  %v1036 = vmul.f32 %v1030, %v1030
  %v1037 = vadd.f32 %v1031, %v1032
  %1038 = vadd.xlane.f32.xlu0 %v1037
  %v1039 = vpop.xlane.xlu0 %1038
  %v1040 = vadd.f32 %v1033, %v1034
  %1041 = vadd.xlane.f32.xlu0 %v1040
  %v1042 = vpop.xlane.xlu0 %1041
  %v1043 = vadd.f32 %v1035, %v1036
  %1044 = vadd.xlane.f32.xlu0 %v1043
  %v1045 = vpop.xlane.xlu0 %1044
  %v1046 = vmul.f32 %v1039, %v598
  %v1047 = vmul.f32 %v1042, %v598
  %v1048 = vmul.f32 %v1045, %v598
  %v1049 = vadd.f32 %v1046, 1e-05
  %v1050 = vadd.f32 %v1047, 1e-05
  %v1051 = vadd.f32 %v1048, 1e-05
  %v1052 = vrsqrt.pop %v1049
  %v1053 = vrsqrt.pop %v1050
  %v1054 = vrsqrt.pop %v1051
  %v1055 = vmul.f32 %v60, %v1052
  %v1056 = vmul.f32 %v61, %v1053
  %v1057 = vmul.f32 %v62, %v1054
  %1059 = vset.pattern.permute.xlu0 5
  %1060 = vperm.xlu0 %1059, %v1055
  %v1061 = vpop.permute.xlu0 %1060
  %1064 = vset.pattern.permute.xlu0 5
  %1065 = vperm.xlu0 %1064, %v1056
  %v1066 = vpop.permute.xlu0 %1065
  %1069 = vset.pattern.permute.xlu0 5
  %1070 = vperm.xlu0 %1069, %v1057
  %v1071 = vpop.permute.xlu0 %1070
  %v1073 = vmul.f32 %v997, %v1061
  %v1074 = vmul.f32 %v999, %v1061
  %v1075 = vmul.f32 %v1003, %v1066
  %v1076 = vmul.f32 %v1005, %v1066
  %v1077 = vmul.f32 %v1009, %v1071
  %v1078 = vmul.f32 %v1011, %v1071
  %v1079 = vmul.f32 %v1022, %v1055
  %v1080 = vmul.f32 %v1023, %v1056
  %v1081 = vmul.f32 %v1024, %v1057
  %1085 = vrot.lane.b32.xlu0 %v1079, 1
  %v1086 = vpop.permute.xlu0 %1085
  %1087 = vrot.lane.b32.xlu0 %v1080, 1
  %v1088 = vpop.permute.xlu0 %1087
  %1089 = vrot.lane.b32.xlu0 %v1081, 1
  %v1090 = vpop.permute.xlu0 %1089
  %v1094 = vsub.f32 %v60, %v1086
  %v1095 = vsub.f32 %v61, %v1088
  %v1096 = vsub.f32 %v62, %v1090
  %1098 = vset.pattern.permute.xlu0 6
  %1099 = vperm.xlu0 %1098, %v1094
  %v1100 = vpop.permute.xlu0 %1099
  %1103 = vset.pattern.permute.xlu0 6
  %1104 = vperm.xlu0 %1103, %v1095
  %v1105 = vpop.permute.xlu0 %1104
  %1108 = vset.pattern.permute.xlu0 6
  %1109 = vperm.xlu0 %1108, %v1096
  %v1110 = vpop.permute.xlu0 %1109
  %v1112 = vadd.f32 %v1073, %v1100
  %v1113 = vadd.f32 %v1074, %v1100
  %v1114 = vadd.f32 %v1075, %v1105
  %v1115 = vadd.f32 %v1076, %v1105
  %v1116 = vadd.f32 %v1077, %v1110
  %v1117 = vadd.f32 %v1078, %v1110
  %v1118 = vld [vmem:[%s4] sm:$0xff]
  %v1119 = vld [vmem:[%s4 + $0x8] sm:$0xff]
  %v1120 = vld [vmem:[%s4 + $0x10] sm:$0xff]
  %1121 = vrot.lane.b32.xlu0 %v1112, 1
  %v1122 = vpop.permute.xlu0 %1121
  %1123 = vrot.lane.b32.xlu0 %v1114, 1
  %v1124 = vpop.permute.xlu0 %1123
  %1125 = vrot.lane.b32.xlu0 %v1116, 1
  %v1126 = vpop.permute.xlu0 %1125
  %1127 = vrot.lane.b32.xlu0 %v1113, 1
  %v1128 = vpop.permute.xlu0 %1127
  %1129 = vrot.lane.b32.xlu0 %v1115, 1
  %v1130 = vpop.permute.xlu0 %1129
  %1131 = vrot.lane.b32.xlu0 %v1117, 1
  %v1132 = vpop.permute.xlu0 %1131
  %v1133 = vsel %vm87, %v1122, %v1128
  %v1134 = vsel %vm87, %v1124, %v1130
  %v1135 = vsel %vm87, %v1126, %v1132
  %v1136 = vsel %vm87, %v1128, %v1122
  %v1137 = vsel %vm87, %v1130, %v1124
  %v1138 = vsel %vm87, %v1132, %v1126
  %v1139 = vsel %vm94, %v1136, 0.0
  %v1140 = vsel %vm95, %v1133, 0.0
  %v1141 = vsel %vm94, %v1137, 0.0
  %v1142 = vsel %vm95, %v1134, 0.0
  %v1143 = vsel %vm94, %v1138, 0.0
  %v1144 = vsel %vm95, %v1135, 0.0
  %1145 = vrot.lane.b32.xlu0 %v1112, 127
  %v1146 = vpop.permute.xlu0 %1145
  %1147 = vrot.lane.b32.xlu0 %v1114, 127
  %v1148 = vpop.permute.xlu0 %1147
  %1149 = vrot.lane.b32.xlu0 %v1116, 127
  %v1150 = vpop.permute.xlu0 %1149
  %1151 = vrot.lane.b32.xlu0 %v1113, 127
  %v1152 = vpop.permute.xlu0 %1151
  %1153 = vrot.lane.b32.xlu0 %v1115, 127
  %v1154 = vpop.permute.xlu0 %1153
  %1155 = vrot.lane.b32.xlu0 %v1117, 127
  %v1156 = vpop.permute.xlu0 %1155
  %v1157 = vsel %vm108, %v1146, %v1152
  %v1158 = vsel %vm108, %v1148, %v1154
  %v1159 = vsel %vm108, %v1150, %v1156
  %v1160 = vsel %vm108, %v1152, %v1146
  %v1161 = vsel %vm108, %v1154, %v1148
  %v1162 = vsel %vm108, %v1156, %v1150
  %v1163 = vsel %vm115, %v1157, 0.0
  %v1164 = vsel %vm116, %v1160, 0.0
  %v1165 = vsel %vm115, %v1158, 0.0
  %v1166 = vsel %vm116, %v1161, 0.0
  %v1167 = vsel %vm115, %v1159, 0.0
  %v1168 = vsel %vm116, %v1162, 0.0
  %1169 = vset.pattern.permute.xlu0 7
  %1170 = vperm.xlu0 %1169, %v60
  %v1171 = vpop.permute.xlu0 %1170
  %1173 = vset.pattern.permute.xlu0 7
  %1174 = vperm.xlu0 %1173, %v61
  %v1175 = vpop.permute.xlu0 %1174
  %1177 = vset.pattern.permute.xlu0 7
  %1178 = vperm.xlu0 %1177, %v62
  %v1179 = vpop.permute.xlu0 %1178
  %v1182 = vsel %vm920, %v1118, 0
  %v1185 = vsel %vm920, %v1119, 0
  %v1188 = vsel %vm920, %v1120, 0
  %1190 = vmatprep.subr.mxu0 %v1140
  %1191 = vmatpush1.msra.mxu0 %v1139
  %1192 = vmatprep.subr.mxu0 %v1142
  %1193 = vmatpush1.msra.mxu0 %v1141
  %1194 = vmatprep.subr.mxu0 %v1144
  %1195 = vmatpush1.msra.mxu0 %v1143
  %1196 = vmatprep.subr.mxu0 %v1113
  %1197 = vmatpush1.msra.mxu0 %v1112
  %1198 = vmatprep.subr.mxu0 %v1115
  %1199 = vmatpush1.msra.mxu0 %v1114
  %1200 = vmatprep.subr.mxu0 %v1117
  %1201 = vmatpush1.msra.mxu0 %v1116
  %1202 = vmatprep.subr.mxu0 %v1164
  %1203 = vmatpush1.msra.mxu0 %v1163
  %1204 = vmatprep.subr.mxu0 %v1166
  %1205 = vmatpush1.msra.mxu0 %v1165
  %1206 = vmatprep.subr.mxu0 %v1168
  %1207 = vmatpush1.msra.mxu0 %v1167
  %1208 = vmatprep.subr.mxu0 0.0
  %1209 = vmatpush1.msra.mxu0 0.0
  %1210 = vmatprep.subr.mxu0 0.0
  %1211 = vmatpush1.msra.mxu0 0.0
  %1212 = vmatprep.subr.mxu0 0.0
  %1213 = vmatpush1.msra.mxu0 0.0
  %1214 = vmatprep.subr.mxu0 0.0
  %1215 = vmatpush1.msra.mxu0 0.0
  %1216 = vmatprep.subr.mxu0 0.0
  %1217 = vmatpush1.msra.mxu0 0.0
  %1218 = vmatprep.subr.mxu0 0.0
  %1219 = vmatpush1.msra.mxu0 0.0
  %1220 = vmatprep.subr.mxu0 0.0
  %1221 = vmatpush1.msra.mxu0 0.0
  %1222 = vmatprep.subr.mxu0 0.0
  %1223 = vmatpush1.msra.mxu0 0.0
  %1224 = vmatprep.subr.mxu0 0.0
  %1225 = vmatpush1.msra.mxu0 0.0
  %1226 = vmatprep.subr.mxu0 0.0
  %1227 = vmatpush1.msra.mxu0 0.0
  %1228 = vmatprep.subr.mxu0 0.0
  %1229 = vmatpush1.msra.mxu0 0.0
  %1230 = vmatprep.subr.mxu0 0.0
  %1231 = vmatpush1.msra.mxu0 0.0
  %1232 = vmatprep.subr.mxu0 0.0
  %1233 = vmatpush1.msra.mxu0 0.0
  %1234 = vmatprep.subr.mxu0 0.0
  %1235 = vmatpush1.msra.mxu0 0.0
  %1236 = vmatprep.subr.mxu0 0.0
  %1237 = vmatpush1.msra.mxu0 0.0
  %1238 = vmatprep.subr.mxu0 0.0
  %1239 = vmatpush1.msra.mxu0 0.0
  %1240 = vmatprep.subr.mxu0 0.0
  %1241 = vmatpush1.msra.mxu0 0.0
  %1242 = vmatprep.subr.mxu0 0.0
  %1243 = vmatpush1.msra.mxu0 0.0
  %1244 = vmatprep.subr.mxu0 0.0
  %1245 = vmatpush1.msra.mxu0 0.0
  %1246 = vmatprep.subr.mxu0 0.0
  %1247 = vmatpush1.msra.mxu0 0.0
  %1248 = vmatprep.subr.mxu0 0.0
  %1249 = vmatpush1.msra.mxu0 0.0
  %1250 = vmatprep.subr.mxu0 0.0
  %1251 = vmatpush1.msra.mxu0 0.0
  %1252 = vmatprep.subr.mxu0 0.0
  %1253 = vmatpush1.msra.mxu0 0.0
  %1254 = vmatprep.mubr.f32.mxu0 0.0
  %1255 = vmatmul.mubr.f32.gmra.mrb[0].mxu0 %v1182
  %v1256 = vpop.f32.mrb[0].mxu0
  %v1257 = vadd.f32 %v1171, %v1256
  %v1258 = vpop.f32.mrb[0].mxu0
  %v1259 = vadd.f32 %v1171, %v1258
  %1260 = vmatprep.mubr.f32.mxu0 0.0
  %1261 = vmatmul.mubr.f32.gmra.mrb[0].mxu0 %v1185
  %v1262 = vpop.f32.mrb[0].mxu0
  %v1263 = vadd.f32 %v1175, %v1262
  %v1264 = vpop.f32.mrb[0].mxu0
  %v1265 = vadd.f32 %v1175, %v1264
  %1266 = vmatprep.mubr.f32.mxu0 0.0
  %1267 = vmatmul.mubr.f32.gmra.mrb[0].mxu0 %v1188
  %v1268 = vpop.f32.mrb[0].mxu0
  %v1269 = vadd.f32 %v1179, %v1268
  %v1270 = vpop.f32.mrb[0].mxu0
  %v1271 = vadd.f32 %v1179, %v1270
  %1272 = vdwg.mxu0
  %v1273 = vadd.f32 %v1257, %v1259
  %1274 = vadd.xlane.f32.xlu0 %v1273
  %v1275 = vpop.xlane.xlu0 %1274
  %v1276 = vadd.f32 %v1263, %v1265
  %1277 = vadd.xlane.f32.xlu0 %v1276
  %v1278 = vpop.xlane.xlu0 %1277
  %v1279 = vadd.f32 %v1269, %v1271
  %1280 = vadd.xlane.f32.xlu0 %v1279
  %v1281 = vpop.xlane.xlu0 %1280
  %v1282 = vmul.f32 %v1275, %v598
  %v1283 = vmul.f32 %v1278, %v598
  %v1284 = vmul.f32 %v1281, %v598
  %v1285 = vsub.f32 %v1257, %v1282
  %v1286 = vsub.f32 %v1259, %v1282
  %v1287 = vsub.f32 %v1263, %v1283
  %v1288 = vsub.f32 %v1265, %v1283
  %v1289 = vsub.f32 %v1269, %v1284
  %v1290 = vsub.f32 %v1271, %v1284
  %v1291 = vmul.f32 %v1285, %v1285
  %v1292 = vmul.f32 %v1286, %v1286
  %v1293 = vmul.f32 %v1287, %v1287
  %v1294 = vmul.f32 %v1288, %v1288
  %v1295 = vmul.f32 %v1289, %v1289
  %v1296 = vmul.f32 %v1290, %v1290
  %v1297 = vadd.f32 %v1291, %v1292
  %1298 = vadd.xlane.f32.xlu0 %v1297
  %v1299 = vpop.xlane.xlu0 %1298
  %v1300 = vadd.f32 %v1293, %v1294
  %1301 = vadd.xlane.f32.xlu0 %v1300
  %v1302 = vpop.xlane.xlu0 %1301
  %v1303 = vadd.f32 %v1295, %v1296
  %1304 = vadd.xlane.f32.xlu0 %v1303
  %v1305 = vpop.xlane.xlu0 %1304
  %v1306 = vmul.f32 %v1299, %v598
  %v1307 = vmul.f32 %v1302, %v598
  %v1308 = vmul.f32 %v1305, %v598
  %v1309 = vadd.f32 %v1306, 1e-05
  %v1310 = vadd.f32 %v1307, 1e-05
  %v1311 = vadd.f32 %v1308, 1e-05
  %v1312 = vrsqrt.pop %v1309
  %v1313 = vrsqrt.pop %v1310
  %v1314 = vrsqrt.pop %v1311
  %v1315 = vmul.f32 %v60, %v1312
  %v1316 = vmul.f32 %v61, %v1313
  %v1317 = vmul.f32 %v62, %v1314
  %1319 = vset.pattern.permute.xlu0 8
  %1320 = vperm.xlu0 %1319, %v1315
  %v1321 = vpop.permute.xlu0 %1320
  %1324 = vset.pattern.permute.xlu0 8
  %1325 = vperm.xlu0 %1324, %v1316
  %v1326 = vpop.permute.xlu0 %1325
  %1329 = vset.pattern.permute.xlu0 8
  %1330 = vperm.xlu0 %1329, %v1317
  %v1331 = vpop.permute.xlu0 %1330
  %v1333 = vmul.f32 %v1257, %v1321
  %v1334 = vmul.f32 %v1259, %v1321
  %v1335 = vmul.f32 %v1263, %v1326
  %v1336 = vmul.f32 %v1265, %v1326
  %v1337 = vmul.f32 %v1269, %v1331
  %v1338 = vmul.f32 %v1271, %v1331
  %v1339 = vmul.f32 %v1282, %v1315
  %v1340 = vmul.f32 %v1283, %v1316
  %v1341 = vmul.f32 %v1284, %v1317
  %1345 = vrot.lane.b32.xlu0 %v1339, 1
  %v1346 = vpop.permute.xlu0 %1345
  %1347 = vrot.lane.b32.xlu0 %v1340, 1
  %v1348 = vpop.permute.xlu0 %1347
  %1349 = vrot.lane.b32.xlu0 %v1341, 1
  %v1350 = vpop.permute.xlu0 %1349
  %v1354 = vsub.f32 %v60, %v1346
  %v1355 = vsub.f32 %v61, %v1348
  %v1356 = vsub.f32 %v62, %v1350
  %1358 = vset.pattern.permute.xlu0 9
  %1359 = vperm.xlu0 %1358, %v1354
  %v1360 = vpop.permute.xlu0 %1359
  %1363 = vset.pattern.permute.xlu0 9
  %1364 = vperm.xlu0 %1363, %v1355
  %v1365 = vpop.permute.xlu0 %1364
  %1368 = vset.pattern.permute.xlu0 9
  %1369 = vperm.xlu0 %1368, %v1356
  %v1370 = vpop.permute.xlu0 %1369
  %v1372 = vadd.f32 %v1333, %v1360
  %v1373 = vadd.f32 %v1334, %v1360
  %v1374 = vadd.f32 %v1335, %v1365
  %v1375 = vadd.f32 %v1336, %v1365
  %v1376 = vadd.f32 %v1337, %v1370
  %v1377 = vadd.f32 %v1338, %v1370
  %v1378 = vmax.f32 %v1372, 0.0
  %v1379 = vmax.f32 %v1373, 0.0
  %v1380 = vmax.f32 %v1374, 0.0
  %v1381 = vmax.f32 %v1375, 0.0
  %v1382 = vmax.f32 %v1376, 0.0
  %v1383 = vmax.f32 %v1377, 0.0
  %v1384 = vld [vmem:[%s5] sm:$0xff]
  %v1385 = vld [vmem:[%s5 + $0x8] sm:$0xff]
  %v1386 = vld [vmem:[%s5 + $0x10] sm:$0xff]
  %1387 = vrot.lane.b32.xlu0 %v1378, 1
  %v1388 = vpop.permute.xlu0 %1387
  %1389 = vrot.lane.b32.xlu0 %v1380, 1
  %v1390 = vpop.permute.xlu0 %1389
  %1391 = vrot.lane.b32.xlu0 %v1382, 1
  %v1392 = vpop.permute.xlu0 %1391
  %1393 = vrot.lane.b32.xlu0 %v1379, 1
  %v1394 = vpop.permute.xlu0 %1393
  %1395 = vrot.lane.b32.xlu0 %v1381, 1
  %v1396 = vpop.permute.xlu0 %1395
  %1397 = vrot.lane.b32.xlu0 %v1383, 1
  %v1398 = vpop.permute.xlu0 %1397
  %v1399 = vsel %vm87, %v1388, %v1394
  %v1400 = vsel %vm87, %v1390, %v1396
  %v1401 = vsel %vm87, %v1392, %v1398
  %v1402 = vsel %vm87, %v1394, %v1388
  %v1403 = vsel %vm87, %v1396, %v1390
  %v1404 = vsel %vm87, %v1398, %v1392
  %v1405 = vsel %vm94, %v1402, 0.0
  %v1406 = vsel %vm95, %v1399, 0.0
  %v1407 = vsel %vm94, %v1403, 0.0
  %v1408 = vsel %vm95, %v1400, 0.0
  %v1409 = vsel %vm94, %v1404, 0.0
  %v1410 = vsel %vm95, %v1401, 0.0
  %1411 = vrot.lane.b32.xlu0 %v1378, 127
  %v1412 = vpop.permute.xlu0 %1411
  %1413 = vrot.lane.b32.xlu0 %v1380, 127
  %v1414 = vpop.permute.xlu0 %1413
  %1415 = vrot.lane.b32.xlu0 %v1382, 127
  %v1416 = vpop.permute.xlu0 %1415
  %1417 = vrot.lane.b32.xlu0 %v1379, 127
  %v1418 = vpop.permute.xlu0 %1417
  %1419 = vrot.lane.b32.xlu0 %v1381, 127
  %v1420 = vpop.permute.xlu0 %1419
  %1421 = vrot.lane.b32.xlu0 %v1383, 127
  %v1422 = vpop.permute.xlu0 %1421
  %v1423 = vsel %vm108, %v1412, %v1418
  %v1424 = vsel %vm108, %v1414, %v1420
  %v1425 = vsel %vm108, %v1416, %v1422
  %v1426 = vsel %vm108, %v1418, %v1412
  %v1427 = vsel %vm108, %v1420, %v1414
  %v1428 = vsel %vm108, %v1422, %v1416
  %v1429 = vsel %vm115, %v1423, 0.0
  %v1430 = vsel %vm116, %v1426, 0.0
  %v1431 = vsel %vm115, %v1424, 0.0
  %v1432 = vsel %vm116, %v1427, 0.0
  %v1433 = vsel %vm115, %v1425, 0.0
  %v1434 = vsel %vm116, %v1428, 0.0
  %1435 = vset.pattern.permute.xlu0 10
  %1436 = vperm.xlu0 %1435, %v60
  %v1437 = vpop.permute.xlu0 %1436
  %1439 = vset.pattern.permute.xlu0 10
  %1440 = vperm.xlu0 %1439, %v61
  %v1441 = vpop.permute.xlu0 %1440
  %1443 = vset.pattern.permute.xlu0 10
  %1444 = vperm.xlu0 %1443, %v62
  %v1445 = vpop.permute.xlu0 %1444
  %v1448 = vsel %vm920, %v1384, 0
  %v1451 = vsel %vm920, %v1385, 0
  %v1454 = vsel %vm920, %v1386, 0
  %1456 = vmatprep.subr.mxu0 %v1406
  %1457 = vmatpush1.msra.mxu0 %v1405
  %1458 = vmatprep.subr.mxu0 %v1408
  %1459 = vmatpush1.msra.mxu0 %v1407
  %1460 = vmatprep.subr.mxu0 %v1410
  %1461 = vmatpush1.msra.mxu0 %v1409
  %1462 = vmatprep.subr.mxu0 %v1379
  %1463 = vmatpush1.msra.mxu0 %v1378
  %1464 = vmatprep.subr.mxu0 %v1381
  %1465 = vmatpush1.msra.mxu0 %v1380
  %1466 = vmatprep.subr.mxu0 %v1383
  %1467 = vmatpush1.msra.mxu0 %v1382
  %1468 = vmatprep.subr.mxu0 %v1430
  %1469 = vmatpush1.msra.mxu0 %v1429
  %1470 = vmatprep.subr.mxu0 %v1432
  %1471 = vmatpush1.msra.mxu0 %v1431
  %1472 = vmatprep.subr.mxu0 %v1434
  %1473 = vmatpush1.msra.mxu0 %v1433
  %1474 = vmatprep.subr.mxu0 0.0
  %1475 = vmatpush1.msra.mxu0 0.0
  %1476 = vmatprep.subr.mxu0 0.0
  %1477 = vmatpush1.msra.mxu0 0.0
  %1478 = vmatprep.subr.mxu0 0.0
  %1479 = vmatpush1.msra.mxu0 0.0
  %1480 = vmatprep.subr.mxu0 0.0
  %1481 = vmatpush1.msra.mxu0 0.0
  %1482 = vmatprep.subr.mxu0 0.0
  %1483 = vmatpush1.msra.mxu0 0.0
  %1484 = vmatprep.subr.mxu0 0.0
  %1485 = vmatpush1.msra.mxu0 0.0
  %1486 = vmatprep.subr.mxu0 0.0
  %1487 = vmatpush1.msra.mxu0 0.0
  %1488 = vmatprep.subr.mxu0 0.0
  %1489 = vmatpush1.msra.mxu0 0.0
  %1490 = vmatprep.subr.mxu0 0.0
  %1491 = vmatpush1.msra.mxu0 0.0
  %1492 = vmatprep.subr.mxu0 0.0
  %1493 = vmatpush1.msra.mxu0 0.0
  %1494 = vmatprep.subr.mxu0 0.0
  %1495 = vmatpush1.msra.mxu0 0.0
  %1496 = vmatprep.subr.mxu0 0.0
  %1497 = vmatpush1.msra.mxu0 0.0
  %1498 = vmatprep.subr.mxu0 0.0
  %1499 = vmatpush1.msra.mxu0 0.0
  %1500 = vmatprep.subr.mxu0 0.0
  %1501 = vmatpush1.msra.mxu0 0.0
  %1502 = vmatprep.subr.mxu0 0.0
  %1503 = vmatpush1.msra.mxu0 0.0
  %1504 = vmatprep.subr.mxu0 0.0
  %1505 = vmatpush1.msra.mxu0 0.0
  %1506 = vmatprep.subr.mxu0 0.0
  %1507 = vmatpush1.msra.mxu0 0.0
  %1508 = vmatprep.subr.mxu0 0.0
  %1509 = vmatpush1.msra.mxu0 0.0
  %1510 = vmatprep.subr.mxu0 0.0
  %1511 = vmatpush1.msra.mxu0 0.0
  %1512 = vmatprep.subr.mxu0 0.0
  %1513 = vmatpush1.msra.mxu0 0.0
  %1514 = vmatprep.subr.mxu0 0.0
  %1515 = vmatpush1.msra.mxu0 0.0
  %1516 = vmatprep.subr.mxu0 0.0
  %1517 = vmatpush1.msra.mxu0 0.0
  %1518 = vmatprep.subr.mxu0 0.0
  %1519 = vmatpush1.msra.mxu0 0.0
  %1520 = vmatprep.mubr.f32.mxu0 0.0
  %1521 = vmatmul.mubr.f32.gmra.mrb[0].mxu0 %v1448
  %v1522 = vpop.f32.mrb[0].mxu0
  %v1523 = vadd.f32 %v1437, %v1522
  %v1524 = vpop.f32.mrb[0].mxu0
  %v1525 = vadd.f32 %v1437, %v1524
  %1526 = vmatprep.mubr.f32.mxu0 0.0
  %1527 = vmatmul.mubr.f32.gmra.mrb[0].mxu0 %v1451
  %v1528 = vpop.f32.mrb[0].mxu0
  %v1529 = vadd.f32 %v1441, %v1528
  %v1530 = vpop.f32.mrb[0].mxu0
  %v1531 = vadd.f32 %v1441, %v1530
  %1532 = vmatprep.mubr.f32.mxu0 0.0
  %1533 = vmatmul.mubr.f32.gmra.mrb[0].mxu0 %v1454
  %v1534 = vpop.f32.mrb[0].mxu0
  %v1535 = vadd.f32 %v1445, %v1534
  %v1536 = vpop.f32.mrb[0].mxu0
  %v1537 = vadd.f32 %v1445, %v1536
  %1538 = vdwg.mxu0
  %v1539 = vadd.f32 %v1112, %v1523
  %v1540 = vadd.f32 %v1113, %v1525
  %v1541 = vadd.f32 %v1114, %v1529
  %v1542 = vadd.f32 %v1115, %v1531
  %v1543 = vadd.f32 %v1116, %v1535
  %v1544 = vadd.f32 %v1117, %v1537
  %v1545 = vadd.f32 %v1539, %v1540
  %1546 = vadd.xlane.f32.xlu0 %v1545
  %v1547 = vpop.xlane.xlu0 %1546
  %v1548 = vadd.f32 %v1541, %v1542
  %1549 = vadd.xlane.f32.xlu0 %v1548
  %v1550 = vpop.xlane.xlu0 %1549
  %v1551 = vadd.f32 %v1543, %v1544
  %1552 = vadd.xlane.f32.xlu0 %v1551
  %v1553 = vpop.xlane.xlu0 %1552
  %v1554 = vmul.f32 %v1547, %v598
  %v1555 = vmul.f32 %v1550, %v598
  %v1556 = vmul.f32 %v1553, %v598
  %v1557 = vsub.f32 %v1539, %v1554
  %v1558 = vsub.f32 %v1540, %v1554
  %v1559 = vsub.f32 %v1541, %v1555
  %v1560 = vsub.f32 %v1542, %v1555
  %v1561 = vsub.f32 %v1543, %v1556
  %v1562 = vsub.f32 %v1544, %v1556
  %v1563 = vmul.f32 %v1557, %v1557
  %v1564 = vmul.f32 %v1558, %v1558
  %v1565 = vmul.f32 %v1559, %v1559
  %v1566 = vmul.f32 %v1560, %v1560
  %v1567 = vmul.f32 %v1561, %v1561
  %v1568 = vmul.f32 %v1562, %v1562
  %v1569 = vadd.f32 %v1563, %v1564
  %1570 = vadd.xlane.f32.xlu0 %v1569
  %v1571 = vpop.xlane.xlu0 %1570
  %v1572 = vadd.f32 %v1565, %v1566
  %1573 = vadd.xlane.f32.xlu0 %v1572
  %v1574 = vpop.xlane.xlu0 %1573
  %v1575 = vadd.f32 %v1567, %v1568
  %1576 = vadd.xlane.f32.xlu0 %v1575
  %v1577 = vpop.xlane.xlu0 %1576
  %v1578 = vmul.f32 %v1571, %v598
  %v1579 = vmul.f32 %v1574, %v598
  %v1580 = vmul.f32 %v1577, %v598
  %v1581 = vadd.f32 %v1578, 1e-05
  %v1582 = vadd.f32 %v1579, 1e-05
  %v1583 = vadd.f32 %v1580, 1e-05
  %v1584 = vrsqrt.pop %v1581
  %v1585 = vrsqrt.pop %v1582
  %v1586 = vrsqrt.pop %v1583
  %v1587 = vmul.f32 %v60, %v1584
  %v1588 = vmul.f32 %v61, %v1585
  %v1589 = vmul.f32 %v62, %v1586
  %1591 = vset.pattern.permute.xlu0 11
  %1592 = vperm.xlu0 %1591, %v1587
  %v1593 = vpop.permute.xlu0 %1592
  %1596 = vset.pattern.permute.xlu0 11
  %1597 = vperm.xlu0 %1596, %v1588
  %v1598 = vpop.permute.xlu0 %1597
  %1601 = vset.pattern.permute.xlu0 11
  %1602 = vperm.xlu0 %1601, %v1589
  %v1603 = vpop.permute.xlu0 %1602
  %v1605 = vmul.f32 %v1539, %v1593
  %v1606 = vmul.f32 %v1540, %v1593
  %v1607 = vmul.f32 %v1541, %v1598
  %v1608 = vmul.f32 %v1542, %v1598
  %v1609 = vmul.f32 %v1543, %v1603
  %v1610 = vmul.f32 %v1544, %v1603
  %v1611 = vmul.f32 %v1554, %v1587
  %v1612 = vmul.f32 %v1555, %v1588
  %v1613 = vmul.f32 %v1556, %v1589
  %1617 = vrot.lane.b32.xlu0 %v1611, 1
  %v1618 = vpop.permute.xlu0 %1617
  %1619 = vrot.lane.b32.xlu0 %v1612, 1
  %v1620 = vpop.permute.xlu0 %1619
  %1621 = vrot.lane.b32.xlu0 %v1613, 1
  %v1622 = vpop.permute.xlu0 %1621
  %v1626 = vsub.f32 %v60, %v1618
  %v1627 = vsub.f32 %v61, %v1620
  %v1628 = vsub.f32 %v62, %v1622
  %1630 = vset.pattern.permute.xlu0 12
  %1631 = vperm.xlu0 %1630, %v1626
  %v1632 = vpop.permute.xlu0 %1631
  %1635 = vset.pattern.permute.xlu0 12
  %1636 = vperm.xlu0 %1635, %v1627
  %v1637 = vpop.permute.xlu0 %1636
  %1640 = vset.pattern.permute.xlu0 12
  %1641 = vperm.xlu0 %1640, %v1628
  %v1642 = vpop.permute.xlu0 %1641
  %v1644 = vadd.f32 %v1605, %v1632
  %v1645 = vadd.f32 %v1606, %v1632
  %v1646 = vadd.f32 %v1607, %v1637
  %v1647 = vadd.f32 %v1608, %v1637
  %v1648 = vadd.f32 %v1609, %v1642
  %v1649 = vadd.f32 %v1610, %v1642
  %v1650 = vmax.f32 %v1644, 0.0
  %v1651 = vmax.f32 %v1645, 0.0
  %v1652 = vmax.f32 %v1646, 0.0
  %v1653 = vmax.f32 %v1647, 0.0
  %v1654 = vmax.f32 %v1648, 0.0
  %v1655 = vmax.f32 %v1649, 0.0
  %v1656 = vld [vmem:[%s6] sm:$0xff]
  %v1657 = vld [vmem:[%s6 + $0x8] sm:$0xf]
  %1658 = vset.pattern.permute.xlu0 13
  %1659 = vperm.xlu0 %1658, %v60
  %v1660 = vpop.permute.xlu0 %1659
  %1662 = vset.pattern.permute.xlu0 13
  %1663 = vperm.xlu0 %1662, %v61
  %v1664 = vpop.permute.xlu0 %1663
  %vm1666 = vcmask 195584
  %v1668 = vsel %vm1666, %v1656, 0
  %v1671 = vsel %vm1666, %v1657, 0
  %1673 = vmatprep.subr.mxu0 %v1651
  %1674 = vmatpush1.msra.mxu0 %v1650
  %1675 = vmatprep.subr.mxu0 %v1653
  %1676 = vmatpush1.msra.mxu0 %v1652
  %1677 = vmatprep.subr.mxu0 %v1655
  %1678 = vmatpush1.msra.mxu0 %v1654
  %1679 = vmatprep.subr.mxu0 0.0
  %1680 = vmatpush1.msra.mxu0 0.0
  %1681 = vmatprep.subr.mxu0 0.0
  %1682 = vmatpush1.msra.mxu0 0.0
  %1683 = vmatprep.subr.mxu0 0.0
  %1684 = vmatpush1.msra.mxu0 0.0
  %1685 = vmatprep.subr.mxu0 0.0
  %1686 = vmatpush1.msra.mxu0 0.0
  %1687 = vmatprep.subr.mxu0 0.0
  %1688 = vmatpush1.msra.mxu0 0.0
  %1689 = vmatprep.subr.mxu0 0.0
  %1690 = vmatpush1.msra.mxu0 0.0
  %1691 = vmatprep.subr.mxu0 0.0
  %1692 = vmatpush1.msra.mxu0 0.0
  %1693 = vmatprep.subr.mxu0 0.0
  %1694 = vmatpush1.msra.mxu0 0.0
  %1695 = vmatprep.subr.mxu0 0.0
  %1696 = vmatpush1.msra.mxu0 0.0
  %1697 = vmatprep.subr.mxu0 0.0
  %1698 = vmatpush1.msra.mxu0 0.0
  %1699 = vmatprep.subr.mxu0 0.0
  %1700 = vmatpush1.msra.mxu0 0.0
  %1701 = vmatprep.subr.mxu0 0.0
  %1702 = vmatpush1.msra.mxu0 0.0
  %1703 = vmatprep.subr.mxu0 0.0
  %1704 = vmatpush1.msra.mxu0 0.0
  %1705 = vmatprep.subr.mxu0 0.0
  %1706 = vmatpush1.msra.mxu0 0.0
  %1707 = vmatprep.subr.mxu0 0.0
  %1708 = vmatpush1.msra.mxu0 0.0
  %1709 = vmatprep.subr.mxu0 0.0
  %1710 = vmatpush1.msra.mxu0 0.0
  %1711 = vmatprep.subr.mxu0 0.0
  %1712 = vmatpush1.msra.mxu0 0.0
  %1713 = vmatprep.subr.mxu0 0.0
  %1714 = vmatpush1.msra.mxu0 0.0
  %1715 = vmatprep.subr.mxu0 0.0
  %1716 = vmatpush1.msra.mxu0 0.0
  %1717 = vmatprep.subr.mxu0 0.0
  %1718 = vmatpush1.msra.mxu0 0.0
  %1719 = vmatprep.subr.mxu0 0.0
  %1720 = vmatpush1.msra.mxu0 0.0
  %1721 = vmatprep.subr.mxu0 0.0
  %1722 = vmatpush1.msra.mxu0 0.0
  %1723 = vmatprep.subr.mxu0 0.0
  %1724 = vmatpush1.msra.mxu0 0.0
  %1725 = vmatprep.subr.mxu0 0.0
  %1726 = vmatpush1.msra.mxu0 0.0
  %1727 = vmatprep.subr.mxu0 0.0
  %1728 = vmatpush1.msra.mxu0 0.0
  %1729 = vmatprep.subr.mxu0 0.0
  %1730 = vmatpush1.msra.mxu0 0.0
  %1731 = vmatprep.subr.mxu0 0.0
  %1732 = vmatpush1.msra.mxu0 0.0
  %1733 = vmatprep.subr.mxu0 0.0
  %1734 = vmatpush1.msra.mxu0 0.0
  %1735 = vmatprep.subr.mxu0 0.0
  %1736 = vmatpush1.msra.mxu0 0.0
  %1737 = vmatprep.mubr.f32.mxu0 0.0
  %1738 = vmatmul.mubr.f32.gmra.mrb[0].mxu0 %v1668
  %v1739 = vpop.f32.mrb[0].mxu0
  %v1740 = vadd.f32 %v1660, %v1739
  %v1741 = vpop.f32.mrb[0].mxu0
  %v1742 = vadd.f32 %v1660, %v1741
  %1743 = vmatprep.mubr.f32.mxu0 0.0
  %1744 = vmatmul.mubr.f32.gmra.mrb[0].mxu0 %v1671
  %v1745 = vpop.f32.mrb[0].mxu0
  %v1746 = vadd.f32 %v1664, %v1745
  %v1747 = vpop.f32.mrb[0].mxu0
  %v1748 = vadd.f32 %v1664, %v1747
  %1749 = vdwg.mxu0
  %1750 = vst [vmem:[%s8] sm:$0xff] %v1740
  %1751 = vst [vmem:[%s8 + $0x8] sm:$0xff] %v1742
  %1752 = vst [vmem:[%s8 + $0x10] sm:$0xf] %v1746
  %1753 = vst [vmem:[%s8 + $0x18] sm:$0xf] %v1748
  // Predicated region
  $region34: #{deepcnn_forward.1} parent=0 // pred_check
    _
  $region35: #{deepcnn_forward.1} parent=0 // pred_check_branch
    %1755 = sbr.rel (0) target = $region37
  $region36: #{deepcnn_forward.1} parent=0 // pred_region
    _
  $region37: #{deepcnn_forward.1} parent=0 // pred_fallthru
    _
  // Predicated region
  $region38: #{deepcnn_forward.1} parent=0 // pred_check
    _
  $region39: #{deepcnn_forward.1} parent=0 // pred_check_branch
    %1757 = sbr.rel (0) target = $region41
  $region40: #{deepcnn_forward.1} parent=0 // pred_region
    _
  $region41: #{deepcnn_forward.1} parent=0 // pred_fallthru
    _

</llo_original>
